<compile_context>
chip_gen: v7x
topology: tpu7x:2x2x1
jax: 0.10.0
libtpu: 0.0.40
codegen_flags: <defaults>
</compile_context>

<pallas_src>
import functools

import jax
import jax.numpy as jnp
from jax import lax
from jax.experimental import pallas as pl
from jax.experimental.pallas import tpu as pltpu

KERNEL_SIZE = 7
PAD = 3 if KERNEL_SIZE == 7 else 1


# ----------------------------------------------------------------------------
# Kernels
# ----------------------------------------------------------------------------
def _channel_max_update(x_ref, macc_ref):
    """Streamed channel max over this C block (sublane-sized chunks)."""
    _, Cb, _ = x_ref.shape
    cur = macc_ref[...]
    step = 8
    for c0 in range(0, Cb, step):
        hi = min(c0 + step, Cb)
        cur = jnp.maximum(cur, jnp.max(x_ref[:, c0:hi, :], axis=1))
    macc_ref[...] = cur


def _sa_matmul_kernel(x_ref, cm_ref, o_ref, macc_ref):
    """x_ref: (B_blk, C_blk, HW) VMEM.  cm_ref: (HW, HW_pad) dense conv matrix.
    o_ref: (B_blk, 1, HW_pad).  macc_ref: (B_blk, HW) running channel max."""
    c = pl.program_id(1)

    @pl.when(c == 0)
    def _():
        macc_ref[...] = jnp.full(macc_ref.shape, -jnp.inf, jnp.float32)

    _channel_max_update(x_ref, macc_ref)

    @pl.when(c == pl.num_programs(1) - 1)
    def _():
        # One MXU matmul replaces the 49-tap roll loop.
        acc = jnp.dot(macc_ref[...], cm_ref[...],
                      preferred_element_type=jnp.float32,
                      precision=jax.lax.Precision.HIGHEST)
        o_ref[...] = jax.nn.sigmoid(acc)[:, None, :]


def _sa_roll_kernel(x_ref, wp_ref, o_ref, macc_ref, *, H, W, K):
    """Fallback for large HW: 49 in-register rolled taps with precomputed
    masked-weight planes (wp_ref: (K*K, HW))."""
    c = pl.program_id(1)
    P = (K - 1) // 2
    B, _, HW = x_ref.shape

    @pl.when(c == 0)
    def _():
        macc_ref[...] = jnp.full(macc_ref.shape, -jnp.inf, jnp.float32)

    _channel_max_update(x_ref, macc_ref)

    @pl.when(c == pl.num_programs(1) - 1)
    def _():
        m = macc_ref[...]
        acc = jnp.zeros((B, HW), jnp.float32)
        for dy in range(K):
            for dx in range(K):
                s = (dy - P) * W + (dx - P)
                shifted = m if s == 0 else pltpu.roll(m, shift=(-s) % HW, axis=1)
                acc = acc + wp_ref[dy * K + dx, :] * shifted
        o_ref[...] = jax.nn.sigmoid(acc)[:, None, :]


# ----------------------------------------------------------------------------
# Wrapper-side constant construction (pure JAX, runs once)
# ----------------------------------------------------------------------------
def _round_up(x, m):
    return ((x + m - 1) // m) * m


def _build_conv_matrix(weight, H, W, K, hw_out_pad):
    """Dense (HW, hw_out_pad) matrix M with y_flat = m_flat @ M equal to the
    zero-padded 'same' cross-correlation with `weight`."""
    P = (K - 1) // 2
    HW = H * W
    oy, ox, ky, kx = jnp.meshgrid(jnp.arange(H), jnp.arange(W),
                                  jnp.arange(K), jnp.arange(K), indexing="ij")
    sy = oy + ky - P
    sx = ox + kx - P
    valid = (sy >= 0) & (sy < H) & (sx >= 0) & (sx < W)
    src = jnp.clip(sy, 0, H - 1) * W + jnp.clip(sx, 0, W - 1)
    dst = oy * W + ox
    vals = jnp.where(valid, weight[ky, kx], 0.0)
    mat = jnp.zeros((HW, hw_out_pad), jnp.float32)
    mat = mat.at[src.ravel(), dst.ravel()].add(vals.ravel())
    return mat


def _build_weight_planes(weight, H, W, K):
    """(K*K, HW) per-tap weights with zero-padding boundary masks baked in."""
    P = (K - 1) // 2
    oy, ox = jnp.meshgrid(jnp.arange(H), jnp.arange(W), indexing="ij")
    planes = []
    for dy in range(K):
        for dx in range(K):
            sy = oy + dy - P
            sx = ox + dx - P
            valid = (sy >= 0) & (sy < H) & (sx >= 0) & (sx < W)
            planes.append(jnp.where(valid, weight[dy, dx], 0.0).reshape(H * W))
    return jnp.stack(planes, 0).astype(jnp.float32)


# ----------------------------------------------------------------------------
# Block-size / budget selection (generation aware)
# ----------------------------------------------------------------------------
def _chip_budgets():
    """Returns (max_block_bytes, vmem_limit_bytes, num_tensorcores)."""
    vmem_cap = 128 * 1024 * 1024
    n_tc = 1
    try:
        info = pltpu.get_tpu_info()
        vmem_cap = getattr(info, "vmem_capacity_bytes", vmem_cap) or vmem_cap
    except Exception:
        pass
    try:
        kind = jax.devices()[0].device_kind.lower()
        if ("v7" in kind) or ("7x" in kind):
            n_tc = 2
    except Exception:
        pass
    if vmem_cap <= 80 * 1024 * 1024:   # v7x-class: 64 MiB per TensorCore
        return 6 * 1024 * 1024, 48 * 1024 * 1024, n_tc
    return 8 * 1024 * 1024, 64 * 1024 * 1024, n_tc   # v5e / v6e: 128 MiB


def _choose_block_n(N, HW, itemsize, max_block_bytes, num_tensorcores):
    """Prefer sublane-packed (multiple-of-8) batch blocks; only keep >=2 grid
    steps on 2-TensorCore chips, and never at the cost of dropping below 8."""
    fitting = [d for d in range(1, N + 1)
               if N % d == 0 and d * HW * itemsize <= max_block_bytes]
    if not fitting:
        return 1
    mult8 = [d for d in fitting if d % 8 == 0]
    if mult8:
        pool = mult8
        if num_tensorcores >= 2:
            two_step = [d for d in pool if N // d >= 2]
            if two_step:
                pool = two_step
        return max(pool)
    return max(fitting)


def _choose_block_c(C, block_n, HW, itemsize, max_block_bytes):
    best = 1
    for bc in range(1, C + 1):
        if C % bc:
            continue
        if block_n * bc * HW * itemsize <= max_block_bytes:
            best = bc
    return best


# ----------------------------------------------------------------------------
# Public entry point
# ----------------------------------------------------------------------------
def spatial_attention(x, weight):
    """x: (N, C, H, W) float32.  weight: (K, K) float32 (conv1 weight, squeezed).
    Returns (N, 1, H, W) float32."""
    N, C, H, W = x.shape
    K = weight.shape[0]
    HW = H * W
    itemsize = 4

    max_block_bytes, vmem_limit, n_tc = _chip_budgets()
    block_n = _choose_block_n(N, HW, itemsize, max_block_bytes, n_tc)
    block_c = _choose_block_c(C, block_n, HW, itemsize, max_block_bytes)

    x_flat = x.reshape(N, C, HW).astype(jnp.float32)   # free: trailing dims merge
    w32 = weight.astype(jnp.float32)

    # MXU path when the dense conv matrix is cheap (<= 8 MiB of VMEM).
    hw_out_pad = _round_up(HW, 128)
    use_mxu = HW * hw_out_pad * itemsize <= (8 << 20)

    if use_mxu:
        aux = _build_conv_matrix(w32, H, W, K, hw_out_pad)
        aux_spec = pl.BlockSpec((HW, hw_out_pad), lambda b, c: (0, 0))
        kernel = _sa_matmul_kernel
        hw_out = hw_out_pad
    else:
        # TODO(synk): for very large HW consider padding HW to a 128 multiple
        # and verifying pltpu.roll layout-padding behaviour before production.
        aux = _build_weight_planes(w32, H, W, K)
        aux_spec = pl.BlockSpec((K * K, HW), lambda b, c: (0, 0))
        kernel = functools.partial(_sa_roll_kernel, H=H, W=W, K=K)
        hw_out = HW

    grid = (N // block_n, C // block_c)

    out_flat = pl.pallas_call(
        kernel,
        out_shape=jax.ShapeDtypeStruct((N, 1, hw_out), jnp.float32),
        grid_spec=pltpu.PrefetchScalarGridSpec(
            num_scalar_prefetch=0,
            grid=grid,
            in_specs=[
                pl.BlockSpec((block_n, block_c, HW), lambda b, c: (b, c, 0)),
                aux_spec,
            ],
            out_specs=pl.BlockSpec((block_n, 1, hw_out), lambda b, c: (b, 0, 0)),
            scratch_shapes=[pltpu.VMEM((block_n, HW), jnp.float32)],
        ),
        compiler_params=pltpu.CompilerParams(
            dimension_semantics=("parallel", "arbitrary"),
            vmem_limit_bytes=vmem_limit,
        ),
    )(x_flat, aux)

    return out_flat[:, :, :HW].reshape(N, 1, H, W)


# ----------------------------------------------------------------------------
# Pure-JAX reference + test
# ----------------------------------------------------------------------------
def spatial_attention_ref(x, weight):
    m = jnp.max(x, axis=1, keepdims=True)                 # (N, 1, H, W)
    w = weight[None, None, :, :]                          # OIHW = (1, 1, K, K)
    y = lax.conv_general_dilated(
        m, w, window_strides=(1, 1), padding=[(PAD, PAD), (PAD, PAD)],
        dimension_numbers=("NCHW", "OIHW", "NCHW"),
        precision=jax.lax.Precision.HIGHEST)
    return jax.nn.sigmoid(y)


if __name__ == "__main__":
    key = jax.random.PRNGKey(0)
    kx_, kw_ = jax.random.split(key)

    N, C, H, W = 2, 4, 16, 16
    x = jax.random.normal(kx_, (N, C, H, W), dtype=jnp.float32)

    # Deterministic conv1 weight init (PyTorch default: U(-1/sqrt(fan_in), +)).
    fan_in = 1 * KERNEL_SIZE * KERNEL_SIZE
    bound = 1.0 / (fan_in ** 0.5)
    weight = jax.random.uniform(
        kw_, (KERNEL_SIZE, KERNEL_SIZE), dtype=jnp.float32,
        minval=-bound, maxval=bound)

    out = spatial_attention(x, weight)
    out = jax.block_until_ready(out)

    ref = spatial_attention_ref(x, weight)
    assert out.shape == (N, 1, H, W), out.shape
    assert jnp.allclose(out, ref, atol=1e-4, rtol=1e-4), (
        float(jnp.max(jnp.abs(out - ref))))

    print("KERNEL_OK")
</pallas_src>

<mosaic_0001>
module attributes {stable_mosaic.version = 11 : i64} {
  func.func @_sa_matmul_kernel(%arg0: i32, %arg1: i32, %arg2: memref<2x4x256xf32, #tpu.memory_space<vmem>>, %arg3: memref<256x256xf32, #tpu.memory_space<vmem>>, %arg4: memref<2x1x256xf32, #tpu.memory_space<vmem>>, %arg5: memref<2x256xf32, #tpu.memory_space<vmem>>) attributes {dimension_semantics = [#tpu.dimension_semantics<parallel>, #tpu.dimension_semantics<arbitrary>], iteration_bounds = array<i64: 1, 1>, scalar_prefetch = 0 : i64, scratch_operands = 1 : i64, tpu.core_type = #tpu.core_type<tc>, window_params = [{transform_indices = @transform_0, window_bounds = array<i64: 2, 4, 256>}, {pipeline_mode = #tpu.pipeline_mode<synchronous>, transform_indices = @transform_1, window_bounds = array<i64: 256, 256>}, {transform_indices = @transform_2, window_bounds = array<i64: 2, 1, 256>}]} {
    %c0_i32 = arith.constant 0 : i32
    %0 = arith.cmpi eq, %arg1, %c0_i32 : i32
    %1 = arith.extui %0 : i1 to i32
    %c0_i32_0 = arith.constant 0 : i32
    %2 = arith.cmpi ne, %1, %c0_i32_0 : i32
    scf.if %2 {
      %cst_9 = arith.constant 0xFF800000 : f32
      %11 = vector.broadcast %cst_9 : f32 to vector<2x256xf32>
      %c0_10 = arith.constant 0 : index
      %c0_11 = arith.constant 0 : index
      %12 = vector.load %arg5[%c0_10, %c0_11] : memref<2x256xf32, #tpu.memory_space<vmem>>, vector<2x256xf32>
      tpu.vector_store %arg5[%c0_10, %c0_11], %11 {strides = array<i32>} : memref<2x256xf32, #tpu.memory_space<vmem>>, vector<2x256xf32>,
    } else {
    }
    %c0 = arith.constant 0 : index
    %c0_1 = arith.constant 0 : index
    %3 = vector.load %arg5[%c0, %c0_1] : memref<2x256xf32, #tpu.memory_space<vmem>>, vector<2x256xf32>
    %c0_2 = arith.constant 0 : index
    %c0_3 = arith.constant 0 : index
    %c0_4 = arith.constant 0 : index
    %4 = vector.load %arg2[%c0_2, %c0_3, %c0_4] : memref<2x4x256xf32, #tpu.memory_space<vmem>>, vector<2x4x256xf32>
    %cst = arith.constant dense<0xFF800000> : vector<2x256xf32>
    %5 = vector.multi_reduction <maximumf>, %4, %cst [1] : vector<2x4x256xf32> to vector<2x256xf32>
    %6 = arith.maximumf %3, %5 : vector<2x256xf32>
    %c0_5 = arith.constant 0 : index
    %c0_6 = arith.constant 0 : index
    %7 = vector.load %arg5[%c0_5, %c0_6] : memref<2x256xf32, #tpu.memory_space<vmem>>, vector<2x256xf32>
    tpu.vector_store %arg5[%c0_5, %c0_6], %6 {strides = array<i32>} : memref<2x256xf32, #tpu.memory_space<vmem>>, vector<2x256xf32>,
    %c0_i32_7 = arith.constant 0 : i32
    %8 = arith.cmpi eq, %arg1, %c0_i32_7 : i32
    %9 = arith.extui %8 : i1 to i32
    %c0_i32_8 = arith.constant 0 : i32
    %10 = arith.cmpi ne, %9, %c0_i32_8 : i32
    scf.if %10 {
      %c0_9 = arith.constant 0 : index
      %c0_10 = arith.constant 0 : index
      %11 = vector.load %arg5[%c0_9, %c0_10] : memref<2x256xf32, #tpu.memory_space<vmem>>, vector<2x256xf32>
      %c0_11 = arith.constant 0 : index
      %c0_12 = arith.constant 0 : index
      %12 = vector.load %arg3[%c0_11, %c0_12] : memref<256x256xf32, #tpu.memory_space<vmem>>, vector<256x256xf32>
      %cst_13 = arith.constant dense<0.000000e+00> : vector<2x256xf32>
      %13 = tpu.matmul %11, %12, %cst_13 {dimension_numbers = #tpu.dot_dimension_numbers<[1], [0], [0], [1], [0, 0, 1, 1], [], []>, precision = #tpu.contract_precision<fp32>} : vector<2x256xf32>, vector<256x256xf32>, vector<2x256xf32> -> vector<2x256xf32>
      %14 = arith.negf %13 : vector<2x256xf32>
      %15 = math.exp %14 : vector<2x256xf32>
      %cst_14 = arith.constant 1.000000e+00 : f32
      %16 = vector.broadcast %cst_14 : f32 to vector<2x256xf32>
      %17 = arith.addf %16, %15 : vector<2x256xf32>
      %18 = arith.divf %16, %17 : vector<2x256xf32>
      %19 = vector.shape_cast %18 : vector<2x256xf32> to vector<2x1x256xf32>
      %c0_15 = arith.constant 0 : index
      %c0_16 = arith.constant 0 : index
      %c0_17 = arith.constant 0 : index
      %20 = vector.load %arg4[%c0_15, %c0_16, %c0_17] : memref<2x1x256xf32, #tpu.memory_space<vmem>>, vector<2x1x256xf32>
      tpu.vector_store %arg4[%c0_15, %c0_16, %c0_17], %19 {strides = array<i32>} : memref<2x1x256xf32, #tpu.memory_space<vmem>>, vector<2x1x256xf32>,
    } else {
    }
    return
  }
  func.func @transform_0(%arg0: i32, %arg1: i32) -> (i32, i32, i32) {
    %c0_i32 = arith.constant 0 : i32
    %c0_i32_0 = arith.constant 0 : i32
    return %arg0, %arg1, %c0_i32 : i32, i32, i32
  }
  func.func @transform_1(%arg0: i32, %arg1: i32) -> (i32, i32) {
    %c0_i32 = arith.constant 0 : i32
    %c0_i32_0 = arith.constant 0 : i32
    %c0_i32_1 = arith.constant 0 : i32
    return %c0_i32, %c0_i32_0 : i32, i32
  }
  func.func @transform_2(%arg0: i32, %arg1: i32) -> (i32, i32, i32) {
    %c0_i32 = arith.constant 0 : i32
    %c0_i32_0 = arith.constant 0 : i32
    %c0_i32_1 = arith.constant 0 : i32
    return %arg0, %c0_i32, %c0_i32_0 : i32, i32, i32
  }
}

</mosaic_0001>

<llo_original>
// kernel: tpu_custom_call.1
$region0: #{tpu_custom_call.1}
  #allocation0 [shape = 'u32[]', space=smem, size = 0x4, offset = 0x4, fixed_abs, tag = 'smem constant byte address 0x4 - core index']
  #allocation1 [shape = 'u32[144,128]{1,0:T(1,128)}', space=vmem, size = 0x12000, scoped, tag = 'internal scratch']
  #allocation2 [shape = 'f32[2,256]{1,0:T(2,128)}', space=vmem, size = 0x800, scoped, tag = 'scratch operand']
  %s0 = inlined_call_operand.hbm [shape: f32[2,4,256], index: 0, kind: input, shape index: {}]
  %s1 = inlined_call_operand.hbm [shape: f32[256,256], index: 1, kind: input, shape index: {}]
  %s2 = inlined_call_operand.hbm [shape: f32[2,1,256], index: 2, kind: output, shape index: {}]
  %s3 = sld [smem:[#allocation0]]
  $region34: #{tpu_custom_call.1} parent=0
    _
  %s5 = ssub.s32 1, %s3
  %s6 = scalar_select 0, %s5, %s3
  $region1: #{tpu_custom_call.1} parent=0
    #allocation3 [shape = 'u8[8192]{0}', space=vmem, size = 0x2000, scoped, tag = 'input window, operand 0, single buffered']
    #allocation4 [shape = 's32[1]{0}', space=sflag, size = 0x4, scoped, tag = 'scoped memory for tpu_custom_call.1']
    #allocation5 [shape = 's32[1]{0}', space=sflag, size = 0x4, scoped, tag = 'scoped memory for tpu_custom_call.1']
    #allocation6 [shape = 'u8[262144]{0}', space=vmem, size = 0x40000, scoped, tag = 'input window, operand 1, single buffered']
    #allocation7 [shape = 's32[1]{0}', space=sflag, size = 0x4, scoped, tag = 'scoped memory for tpu_custom_call.1']
    #allocation8 [shape = 'u8[2048]{0}', space=vmem, size = 0x800, scoped, tag = 'output window, operand 0, single buffered']
    %7 = vsyncpa [#allocation4], 0
    %8 = vsyncpa [#allocation7], 0
    %9 = vsyncpa [#allocation5], 0
    // Predicated region
    $region2: #{tpu_custom_call.1} parent=1 // pred_check
      _
    $region3: #{tpu_custom_call.1} parent=1 // pred_check_branch
      %11 = sbr.rel (0) target = $region5
    $region4: #{tpu_custom_call.1} parent=1 // pred_region
      %s13 = ssub.s32 256, 256
      %14 = vsyncadd [#allocation4], %s13
      %s15 = sshll.u32 [#allocation3], 4
      %s16 = int_to_ptr.vmem [resolvable:$true] %s15
      %21 = dma.hbm_to_vmem [thread:$0]  %s0, 256, %s16, [#allocation4], 128, 128, 8
    $region5: #{tpu_custom_call.1} parent=1 // pred_fallthru
      _
    // Predicated region
    $region6: #{tpu_custom_call.1} parent=1 // pred_check
      _
    $region7: #{tpu_custom_call.1} parent=1 // pred_check_branch
      %23 = sbr.rel (0) target = $region9
    $region8: #{tpu_custom_call.1} parent=1 // pred_region
      %s25 = ssub.s32 8192, 8192
      %26 = vsyncadd [#allocation7], %s25
      %s27 = sshll.u32 [#allocation6], 4
      %s28 = int_to_ptr.vmem [resolvable:$true] %s27
      %33 = dma.hbm_to_vmem [thread:$0]  %s1, 8192, %s28, [#allocation7], 256, 256, 16
    $region9: #{tpu_custom_call.1} parent=1 // pred_fallthru
      _
    // Predicated region
    $region10: #{tpu_custom_call.1} parent=1 // pred_check
      _
    $region11: #{tpu_custom_call.1} parent=1 // pred_check_branch
      %35 = sbr.rel (0) target = $region13
    $region12: #{tpu_custom_call.1} parent=1 // pred_region
      %36 = dma.done [#allocation4], 256
    $region13: #{tpu_custom_call.1} parent=1 // pred_fallthru
      _
    // Predicated region
    $region14: #{tpu_custom_call.1} parent=1 // pred_check
      _
    $region15: #{tpu_custom_call.1} parent=1 // pred_check_branch
      %38 = sbr.rel (0) target = $region17
    $region16: #{tpu_custom_call.1} parent=1 // pred_region
      %39 = dma.done [#allocation7], 8192
    $region17: #{tpu_custom_call.1} parent=1 // pred_fallthru
      _
    %p40 = scmp.eq.s32.totalorder 0, 0
    // Predicated region
    $region18: #{tpu_custom_call.1} parent=1 // pred_check
      %p41 = pneg %p40
    $region19: #{tpu_custom_call.1} parent=1 // pred_check_branch
      %43 = sbr.rel (%p41) target = $region21
    $region20: #{tpu_custom_call.1} parent=1 // pred_region
      %44 = vst [vmem:[#allocation2] sm:$0xf] -inf
    $region21: #{tpu_custom_call.1} parent=1 // pred_fallthru
      _
    %v45 = vld [vmem:[#allocation2] sm:$0xf]
    %v46 = vld [vmem:[#allocation3] sm:$0xff]
    %v47 = vld [vmem:[#allocation3 + $0x8] sm:$0xff]
    %v50 = vcombine.high %v46, %v46
    %v51 = vcombine.high %v47, %v47
    %vm54 = vcmask 1043456
    %v55 = vsel %vm54, %v46, -inf
    %v56 = vrot.slane %v55, 4
    %v57 = vmax.f32 %v55, %v56
    %v58 = vrot.slane %v57, 2
    %v59 = vmax.f32 %v57, %v58
    %v60 = vrot.slane %v59, 1
    %v61 = vmax.f32 %v59, %v60
    %v62 = vsel %vm54, %v50, -inf
    %v63 = vrot.slane %v62, 4
    %v64 = vmax.f32 %v62, %v63
    %v65 = vrot.slane %v64, 2
    %v66 = vmax.f32 %v64, %v65
    %v67 = vrot.slane %v66, 1
    %v68 = vmax.f32 %v66, %v67
    %v69 = vsel %vm54, %v47, -inf
    %v70 = vrot.slane %v69, 4
    %v71 = vmax.f32 %v69, %v70
    %v72 = vrot.slane %v71, 2
    %v73 = vmax.f32 %v71, %v72
    %v74 = vrot.slane %v73, 1
    %v75 = vmax.f32 %v73, %v74
    %v76 = vsel %vm54, %v51, -inf
    %v77 = vrot.slane %v76, 4
    %v78 = vmax.f32 %v76, %v77
    %v79 = vrot.slane %v78, 2
    %v80 = vmax.f32 %v78, %v79
    %v81 = vrot.slane %v80, 1
    %v82 = vmax.f32 %v80, %v81
    %v87 = vcombine.low %v61, %v68
    %v89 = vunpack.c.l.s4 1983009808
    %v90 = vunpack.c.0.s8 %v89
    %v91 = vlaneseq
    %v92 = vshrl.u32 %v91, 7
    %v93 = vsub.s32 %v90, %v92
    %v94 = vrot.slane %v87, %v93
    %v95 = vcombine.low %v75, %v82
    %v97 = vunpack.c.l.s4 1983009808
    %v98 = vunpack.c.0.s8 %v97
    %v99 = vlaneseq
    %v100 = vshrl.u32 %v99, 7
    %v101 = vsub.s32 %v98, %v100
    %v102 = vrot.slane %v95, %v101
    %vm103 = vcmask 1044484
    %v104 = vsel %vm103, %v94, %v94
    %vm105 = vcmask 1046534
    %v106 = vsel %vm105, %v94, %v104
    %v107 = vrot.slane %v102, 7
    %vm108 = vcmask 1041409
    %v109 = vsel %vm108, %v107, %v106
    %vm110 = vcmask 1043459
    %v111 = vsel %vm110, %v107, %v109
    %vm112 = vcmask 1045509
    %v113 = vsel %vm112, %v107, %v111
    %vm114 = vcmask 1047559
    %v115 = vsel %vm114, %v107, %v113
    %v117 = vmax.f32 %v45, %v115
    %118 = vst [vmem:[#allocation2] sm:$0xf] %v117
    // Predicated region
    $region22: #{tpu_custom_call.1} parent=1 // pred_check
      %p119 = pneg %p40
    $region23: #{tpu_custom_call.1} parent=1 // pred_check_branch
      %121 = sbr.rel (%p119) target = $region25
    $region24: #{tpu_custom_call.1} parent=1 // pred_region
      %v122 = vld [vmem:[#allocation2] sm:$0xf]
      %v123 = vld [vmem:[#allocation6] sm:$0xff]
      %v124 = vld [vmem:[#allocation6 + $0x8] sm:$0xff]
      %v125 = vld [vmem:[#allocation6 + $0x10] sm:$0xff]
      %v126 = vld [vmem:[#allocation6 + $0x18] sm:$0xff]
      %v127 = vld [vmem:[#allocation6 + $0x20] sm:$0xff]
      %v128 = vld [vmem:[#allocation6 + $0x28] sm:$0xff]
      %v129 = vld [vmem:[#allocation6 + $0x30] sm:$0xff]
      %v130 = vld [vmem:[#allocation6 + $0x38] sm:$0xff]
      %v131 = vld [vmem:[#allocation6 + $0x40] sm:$0xff]
      %v132 = vld [vmem:[#allocation6 + $0x48] sm:$0xff]
      %v133 = vld [vmem:[#allocation6 + $0x50] sm:$0xff]
      %v134 = vld [vmem:[#allocation6 + $0x58] sm:$0xff]
      %v135 = vld [vmem:[#allocation6 + $0x60] sm:$0xff]
      %v136 = vld [vmem:[#allocation6 + $0x68] sm:$0xff]
      %v137 = vld [vmem:[#allocation6 + $0x70] sm:$0xff]
      %v138 = vld [vmem:[#allocation6 + $0x78] sm:$0xff]
      %v139 = vld [vmem:[#allocation6 + $0x80] sm:$0xff]
      %v140 = vld [vmem:[#allocation6 + $0x88] sm:$0xff]
      %v141 = vld [vmem:[#allocation6 + $0x90] sm:$0xff]
      %v142 = vld [vmem:[#allocation6 + $0x98] sm:$0xff]
      %v143 = vld [vmem:[#allocation6 + $0xa0] sm:$0xff]
      %v144 = vld [vmem:[#allocation6 + $0xa8] sm:$0xff]
      %v145 = vld [vmem:[#allocation6 + $0xb0] sm:$0xff]
      %v146 = vld [vmem:[#allocation6 + $0xb8] sm:$0xff]
      %v147 = vld [vmem:[#allocation6 + $0xc0] sm:$0xff]
      %v148 = vld [vmem:[#allocation6 + $0xc8] sm:$0xff]
      %v149 = vld [vmem:[#allocation6 + $0xd0] sm:$0xff]
      %v150 = vld [vmem:[#allocation6 + $0xd8] sm:$0xff]
      %v151 = vld [vmem:[#allocation6 + $0xe0] sm:$0xff]
      %v152 = vld [vmem:[#allocation6 + $0xe8] sm:$0xff]
      %v153 = vld [vmem:[#allocation6 + $0xf0] sm:$0xff]
      %v154 = vld [vmem:[#allocation6 + $0xf8] sm:$0xff]
      %v155 = vld [vmem:[#allocation6 + $0x100] sm:$0xff]
      %v156 = vld [vmem:[#allocation6 + $0x108] sm:$0xff]
      %v157 = vld [vmem:[#allocation6 + $0x110] sm:$0xff]
      %v158 = vld [vmem:[#allocation6 + $0x118] sm:$0xff]
      %v159 = vld [vmem:[#allocation6 + $0x120] sm:$0xff]
      %v160 = vld [vmem:[#allocation6 + $0x128] sm:$0xff]
      %v161 = vld [vmem:[#allocation6 + $0x130] sm:$0xff]
      %v162 = vld [vmem:[#allocation6 + $0x138] sm:$0xff]
      %v163 = vld [vmem:[#allocation6 + $0x140] sm:$0xff]
      %v164 = vld [vmem:[#allocation6 + $0x148] sm:$0xff]
      %v165 = vld [vmem:[#allocation6 + $0x150] sm:$0xff]
      %v166 = vld [vmem:[#allocation6 + $0x158] sm:$0xff]
      %v167 = vld [vmem:[#allocation6 + $0x160] sm:$0xff]
      %v168 = vld [vmem:[#allocation6 + $0x168] sm:$0xff]
      %v169 = vld [vmem:[#allocation6 + $0x170] sm:$0xff]
      %v170 = vld [vmem:[#allocation6 + $0x178] sm:$0xff]
      %v171 = vld [vmem:[#allocation6 + $0x180] sm:$0xff]
      %v172 = vld [vmem:[#allocation6 + $0x188] sm:$0xff]
      %v173 = vld [vmem:[#allocation6 + $0x190] sm:$0xff]
      %v174 = vld [vmem:[#allocation6 + $0x198] sm:$0xff]
      %v175 = vld [vmem:[#allocation6 + $0x1a0] sm:$0xff]
      %v176 = vld [vmem:[#allocation6 + $0x1a8] sm:$0xff]
      %v177 = vld [vmem:[#allocation6 + $0x1b0] sm:$0xff]
      %v178 = vld [vmem:[#allocation6 + $0x1b8] sm:$0xff]
      %v179 = vld [vmem:[#allocation6 + $0x1c0] sm:$0xff]
      %v180 = vld [vmem:[#allocation6 + $0x1c8] sm:$0xff]
      %v181 = vld [vmem:[#allocation6 + $0x1d0] sm:$0xff]
      %v182 = vld [vmem:[#allocation6 + $0x1d8] sm:$0xff]
      %v183 = vld [vmem:[#allocation6 + $0x1e0] sm:$0xff]
      %v184 = vld [vmem:[#allocation6 + $0x1e8] sm:$0xff]
      %v185 = vld [vmem:[#allocation6 + $0x1f0] sm:$0xff]
      %v186 = vld [vmem:[#allocation6 + $0x1f8] sm:$0xff]
      %v189 = vunpack.c.l.s4 1983009808
      %v190 = vunpack.c.0.s8 %v189
      %v191 = vlaneseq
      %v192 = vshrl.u32 %v191, 7
      %v193 = vsub.s32 %v190, %v192
      %v194 = vrot.slane %v122, %v193
      %v195 = vcombine.high %v194, %v194
      %v198 = vand.u32 %v124, 4294901760
      %199 = vmatprep.subr.mxu0 %v198
      %v200 = vand.u32 %v123, 4294901760
      %201 = vmatpush1.msra.mxu0 %v200
      %v202 = vand.u32 %v126, 4294901760
      %203 = vmatprep.subr.mxu0 %v202
      %v204 = vand.u32 %v125, 4294901760
      %205 = vmatpush1.msra.mxu0 %v204
      %v206 = vand.u32 %v128, 4294901760
      %207 = vmatprep.subr.mxu0 %v206
      %v208 = vand.u32 %v127, 4294901760
      %209 = vmatpush1.msra.mxu0 %v208
      %v210 = vand.u32 %v130, 4294901760
      %211 = vmatprep.subr.mxu0 %v210
      %v212 = vand.u32 %v129, 4294901760
      %213 = vmatpush1.msra.mxu0 %v212
      %v214 = vand.u32 %v132, 4294901760
      %215 = vmatprep.subr.mxu0 %v214
      %v216 = vand.u32 %v131, 4294901760
      %217 = vmatpush1.msra.mxu0 %v216
      %v218 = vand.u32 %v134, 4294901760
      %219 = vmatprep.subr.mxu0 %v218
      %v220 = vand.u32 %v133, 4294901760
      %221 = vmatpush1.msra.mxu0 %v220
      %v222 = vand.u32 %v136, 4294901760
      %223 = vmatprep.subr.mxu0 %v222
      %v224 = vand.u32 %v135, 4294901760
      %225 = vmatpush1.msra.mxu0 %v224
      %v226 = vand.u32 %v138, 4294901760
      %227 = vmatprep.subr.mxu0 %v226
      %v228 = vand.u32 %v137, 4294901760
      %229 = vmatpush1.msra.mxu0 %v228
      %v230 = vand.u32 %v140, 4294901760
      %231 = vmatprep.subr.mxu0 %v230
      %v232 = vand.u32 %v139, 4294901760
      %233 = vmatpush1.msra.mxu0 %v232
      %v234 = vand.u32 %v142, 4294901760
      %235 = vmatprep.subr.mxu0 %v234
      %v236 = vand.u32 %v141, 4294901760
      %237 = vmatpush1.msra.mxu0 %v236
      %v238 = vand.u32 %v144, 4294901760
      %239 = vmatprep.subr.mxu0 %v238
      %v240 = vand.u32 %v143, 4294901760
      %241 = vmatpush1.msra.mxu0 %v240
      %v242 = vand.u32 %v146, 4294901760
      %243 = vmatprep.subr.mxu0 %v242
      %v244 = vand.u32 %v145, 4294901760
      %245 = vmatpush1.msra.mxu0 %v244
      %v246 = vand.u32 %v148, 4294901760
      %247 = vmatprep.subr.mxu0 %v246
      %v248 = vand.u32 %v147, 4294901760
      %249 = vmatpush1.msra.mxu0 %v248
      %v250 = vand.u32 %v150, 4294901760
      %251 = vmatprep.subr.mxu0 %v250
      %v252 = vand.u32 %v149, 4294901760
      %253 = vmatpush1.msra.mxu0 %v252
      %v254 = vand.u32 %v152, 4294901760
      %255 = vmatprep.subr.mxu0 %v254
      %v256 = vand.u32 %v151, 4294901760
      %257 = vmatpush1.msra.mxu0 %v256
      %v258 = vand.u32 %v154, 4294901760
      %259 = vmatprep.subr.mxu0 %v258
      %v260 = vand.u32 %v153, 4294901760
      %261 = vmatpush1.msra.mxu0 %v260
      %v262 = vand.u32 %v156, 4294901760
      %263 = vmatprep.subr.mxu0 %v262
      %v264 = vand.u32 %v155, 4294901760
      %265 = vmatpush1.msra.mxu0 %v264
      %v266 = vand.u32 %v158, 4294901760
      %267 = vmatprep.subr.mxu0 %v266
      %v268 = vand.u32 %v157, 4294901760
      %269 = vmatpush1.msra.mxu0 %v268
      %v270 = vand.u32 %v160, 4294901760
      %271 = vmatprep.subr.mxu0 %v270
      %v272 = vand.u32 %v159, 4294901760
      %273 = vmatpush1.msra.mxu0 %v272
      %v274 = vand.u32 %v162, 4294901760
      %275 = vmatprep.subr.mxu0 %v274
      %v276 = vand.u32 %v161, 4294901760
      %277 = vmatpush1.msra.mxu0 %v276
      %v278 = vand.u32 %v164, 4294901760
      %279 = vmatprep.subr.mxu0 %v278
      %v280 = vand.u32 %v163, 4294901760
      %281 = vmatpush1.msra.mxu0 %v280
      %v282 = vand.u32 %v166, 4294901760
      %283 = vmatprep.subr.mxu0 %v282
      %v284 = vand.u32 %v165, 4294901760
      %285 = vmatpush1.msra.mxu0 %v284
      %v286 = vand.u32 %v168, 4294901760
      %287 = vmatprep.subr.mxu0 %v286
      %v288 = vand.u32 %v167, 4294901760
      %289 = vmatpush1.msra.mxu0 %v288
      %v290 = vand.u32 %v170, 4294901760
      %291 = vmatprep.subr.mxu0 %v290
      %v292 = vand.u32 %v169, 4294901760
      %293 = vmatpush1.msra.mxu0 %v292
      %v294 = vand.u32 %v172, 4294901760
      %295 = vmatprep.subr.mxu0 %v294
      %v296 = vand.u32 %v171, 4294901760
      %297 = vmatpush1.msra.mxu0 %v296
      %v298 = vand.u32 %v174, 4294901760
      %299 = vmatprep.subr.mxu0 %v298
      %v300 = vand.u32 %v173, 4294901760
      %301 = vmatpush1.msra.mxu0 %v300
      %v302 = vand.u32 %v176, 4294901760
      %303 = vmatprep.subr.mxu0 %v302
      %v304 = vand.u32 %v175, 4294901760
      %305 = vmatpush1.msra.mxu0 %v304
      %v306 = vand.u32 %v178, 4294901760
      %307 = vmatprep.subr.mxu0 %v306
      %v308 = vand.u32 %v177, 4294901760
      %309 = vmatpush1.msra.mxu0 %v308
      %v310 = vand.u32 %v180, 4294901760
      %311 = vmatprep.subr.mxu0 %v310
      %v312 = vand.u32 %v179, 4294901760
      %313 = vmatpush1.msra.mxu0 %v312
      %v314 = vand.u32 %v182, 4294901760
      %315 = vmatprep.subr.mxu0 %v314
      %v316 = vand.u32 %v181, 4294901760
      %317 = vmatpush1.msra.mxu0 %v316
      %v318 = vand.u32 %v184, 4294901760
      %319 = vmatprep.subr.mxu0 %v318
      %v320 = vand.u32 %v183, 4294901760
      %321 = vmatpush1.msra.mxu0 %v320
      %v322 = vand.u32 %v186, 4294901760
      %323 = vmatprep.subr.mxu0 %v322
      %v324 = vand.u32 %v185, 4294901760
      %325 = vmatpush1.msra.mxu0 %v324
      %v326 = vand.u32 %v195, 4294901760
      %v327 = vsub.f32 %v195, %v326
      %v328 = vand.u32 %v327, 4294901760
      %v329 = vsub.f32 %v327, %v328
      %v330 = vand.u32 %v329, 4294901760
      %331 = vmatprep.mubr.f32.mxu0 %v330
      %v332 = vand.u32 %v194, 4294901760
      %v333 = vsub.f32 %v194, %v332
      %v334 = vand.u32 %v333, 4294901760
      %v335 = vsub.f32 %v333, %v334
      %v336 = vand.u32 %v335, 4294901760
      %337 = vmatmul.mubr.f32.gmra.mrb[0].mxu0 %v336
      %v338 = vpop.f32.mrb[0].mxu0
      %v339 = vadd.f32 0.0, %v338
      %v340 = vpop.f32.mrb[0].mxu0
      %v341 = vadd.f32 0.0, %v340
      %342 = vdwg.mxu0
      %v343 = vand.u32 %v124, 4294901760
      %v344 = vsub.f32 %v124, %v343
      %v345 = vand.u32 %v344, 4294901760
      %v346 = vsub.f32 %v344, %v345
      %v347 = vand.u32 %v346, 4294901760
      %348 = vmatprep.subr.mxu0 %v347
      %v349 = vand.u32 %v123, 4294901760
      %v350 = vsub.f32 %v123, %v349
      %v351 = vand.u32 %v350, 4294901760
      %v352 = vsub.f32 %v350, %v351
      %v353 = vand.u32 %v352, 4294901760
      %354 = vmatpush1.msra.mxu0 %v353
      %v355 = vand.u32 %v126, 4294901760
      %v356 = vsub.f32 %v126, %v355
      %v357 = vand.u32 %v356, 4294901760
      %v358 = vsub.f32 %v356, %v357
      %v359 = vand.u32 %v358, 4294901760
      %360 = vmatprep.subr.mxu0 %v359
      %v361 = vand.u32 %v125, 4294901760
      %v362 = vsub.f32 %v125, %v361
      %v363 = vand.u32 %v362, 4294901760
      %v364 = vsub.f32 %v362, %v363
      %v365 = vand.u32 %v364, 4294901760
      %366 = vmatpush1.msra.mxu0 %v365
      %v367 = vand.u32 %v128, 4294901760
      %v368 = vsub.f32 %v128, %v367
      %v369 = vand.u32 %v368, 4294901760
      %v370 = vsub.f32 %v368, %v369
      %v371 = vand.u32 %v370, 4294901760
      %372 = vmatprep.subr.mxu0 %v371
      %v373 = vand.u32 %v127, 4294901760
      %v374 = vsub.f32 %v127, %v373
      %v375 = vand.u32 %v374, 4294901760
      %v376 = vsub.f32 %v374, %v375
      %v377 = vand.u32 %v376, 4294901760
      %378 = vmatpush1.msra.mxu0 %v377
      %v379 = vand.u32 %v130, 4294901760
      %v380 = vsub.f32 %v130, %v379
      %v381 = vand.u32 %v380, 4294901760
      %v382 = vsub.f32 %v380, %v381
      %v383 = vand.u32 %v382, 4294901760
      %384 = vmatprep.subr.mxu0 %v383
      %v385 = vand.u32 %v129, 4294901760
      %v386 = vsub.f32 %v129, %v385
      %v387 = vand.u32 %v386, 4294901760
      %v388 = vsub.f32 %v386, %v387
      %v389 = vand.u32 %v388, 4294901760
      %390 = vmatpush1.msra.mxu0 %v389
      %v391 = vand.u32 %v132, 4294901760
      %v392 = vsub.f32 %v132, %v391
      %v393 = vand.u32 %v392, 4294901760
      %v394 = vsub.f32 %v392, %v393
      %v395 = vand.u32 %v394, 4294901760
      %396 = vmatprep.subr.mxu0 %v395
      %v397 = vand.u32 %v131, 4294901760
      %v398 = vsub.f32 %v131, %v397
      %v399 = vand.u32 %v398, 4294901760
      %v400 = vsub.f32 %v398, %v399
      %v401 = vand.u32 %v400, 4294901760
      %402 = vmatpush1.msra.mxu0 %v401
      %v403 = vand.u32 %v134, 4294901760
      %v404 = vsub.f32 %v134, %v403
      %v405 = vand.u32 %v404, 4294901760
      %v406 = vsub.f32 %v404, %v405
      %v407 = vand.u32 %v406, 4294901760
      %408 = vmatprep.subr.mxu0 %v407
      %v409 = vand.u32 %v133, 4294901760
      %v410 = vsub.f32 %v133, %v409
      %v411 = vand.u32 %v410, 4294901760
      %v412 = vsub.f32 %v410, %v411
      %v413 = vand.u32 %v412, 4294901760
      %414 = vmatpush1.msra.mxu0 %v413
      %v415 = vand.u32 %v136, 4294901760
      %v416 = vsub.f32 %v136, %v415
      %v417 = vand.u32 %v416, 4294901760
      %v418 = vsub.f32 %v416, %v417
      %v419 = vand.u32 %v418, 4294901760
      %420 = vmatprep.subr.mxu0 %v419
      %v421 = vand.u32 %v135, 4294901760
      %v422 = vsub.f32 %v135, %v421
      %v423 = vand.u32 %v422, 4294901760
      %v424 = vsub.f32 %v422, %v423
      %v425 = vand.u32 %v424, 4294901760
      %426 = vmatpush1.msra.mxu0 %v425
      %v427 = vand.u32 %v138, 4294901760
      %v428 = vsub.f32 %v138, %v427
      %v429 = vand.u32 %v428, 4294901760
      %v430 = vsub.f32 %v428, %v429
      %v431 = vand.u32 %v430, 4294901760
      %432 = vmatprep.subr.mxu0 %v431
      %v433 = vand.u32 %v137, 4294901760
      %v434 = vsub.f32 %v137, %v433
      %v435 = vand.u32 %v434, 4294901760
      %v436 = vsub.f32 %v434, %v435
      %v437 = vand.u32 %v436, 4294901760
      %438 = vmatpush1.msra.mxu0 %v437
      %v439 = vand.u32 %v140, 4294901760
      %v440 = vsub.f32 %v140, %v439
      %v441 = vand.u32 %v440, 4294901760
      %v442 = vsub.f32 %v440, %v441
      %v443 = vand.u32 %v442, 4294901760
      %444 = vmatprep.subr.mxu0 %v443
      %v445 = vand.u32 %v139, 4294901760
      %v446 = vsub.f32 %v139, %v445
      %v447 = vand.u32 %v446, 4294901760
      %v448 = vsub.f32 %v446, %v447
      %v449 = vand.u32 %v448, 4294901760
      %450 = vmatpush1.msra.mxu0 %v449
      %v451 = vand.u32 %v142, 4294901760
      %v452 = vsub.f32 %v142, %v451
      %v453 = vand.u32 %v452, 4294901760
      %v454 = vsub.f32 %v452, %v453
      %v455 = vand.u32 %v454, 4294901760
      %456 = vmatprep.subr.mxu0 %v455
      %v457 = vand.u32 %v141, 4294901760
      %v458 = vsub.f32 %v141, %v457
      %v459 = vand.u32 %v458, 4294901760
      %v460 = vsub.f32 %v458, %v459
      %v461 = vand.u32 %v460, 4294901760
      %462 = vmatpush1.msra.mxu0 %v461
      %v463 = vand.u32 %v144, 4294901760
      %v464 = vsub.f32 %v144, %v463
      %v465 = vand.u32 %v464, 4294901760
      %v466 = vsub.f32 %v464, %v465
      %v467 = vand.u32 %v466, 4294901760
      %468 = vmatprep.subr.mxu0 %v467
      %v469 = vand.u32 %v143, 4294901760
      %v470 = vsub.f32 %v143, %v469
      %v471 = vand.u32 %v470, 4294901760
      %v472 = vsub.f32 %v470, %v471
      %v473 = vand.u32 %v472, 4294901760
      %474 = vmatpush1.msra.mxu0 %v473
      %v475 = vand.u32 %v146, 4294901760
      %v476 = vsub.f32 %v146, %v475
      %v477 = vand.u32 %v476, 4294901760
      %v478 = vsub.f32 %v476, %v477
      %v479 = vand.u32 %v478, 4294901760
      %480 = vmatprep.subr.mxu0 %v479
      %v481 = vand.u32 %v145, 4294901760
      %v482 = vsub.f32 %v145, %v481
      %v483 = vand.u32 %v482, 4294901760
      %v484 = vsub.f32 %v482, %v483
      %v485 = vand.u32 %v484, 4294901760
      %486 = vmatpush1.msra.mxu0 %v485
      %v487 = vand.u32 %v148, 4294901760
      %v488 = vsub.f32 %v148, %v487
      %v489 = vand.u32 %v488, 4294901760
      %v490 = vsub.f32 %v488, %v489
      %v491 = vand.u32 %v490, 4294901760
      %492 = vmatprep.subr.mxu0 %v491
      %v493 = vand.u32 %v147, 4294901760
      %v494 = vsub.f32 %v147, %v493
      %v495 = vand.u32 %v494, 4294901760
      %v496 = vsub.f32 %v494, %v495
      %v497 = vand.u32 %v496, 4294901760
      %498 = vmatpush1.msra.mxu0 %v497
      %v499 = vand.u32 %v150, 4294901760
      %v500 = vsub.f32 %v150, %v499
      %v501 = vand.u32 %v500, 4294901760
      %v502 = vsub.f32 %v500, %v501
      %v503 = vand.u32 %v502, 4294901760
      %504 = vmatprep.subr.mxu0 %v503
      %v505 = vand.u32 %v149, 4294901760
      %v506 = vsub.f32 %v149, %v505
      %v507 = vand.u32 %v506, 4294901760
      %v508 = vsub.f32 %v506, %v507
      %v509 = vand.u32 %v508, 4294901760
      %510 = vmatpush1.msra.mxu0 %v509
      %v511 = vand.u32 %v152, 4294901760
      %v512 = vsub.f32 %v152, %v511
      %v513 = vand.u32 %v512, 4294901760
      %v514 = vsub.f32 %v512, %v513
      %v515 = vand.u32 %v514, 4294901760
      %516 = vmatprep.subr.mxu0 %v515
      %v517 = vand.u32 %v151, 4294901760
      %v518 = vsub.f32 %v151, %v517
      %v519 = vand.u32 %v518, 4294901760
      %v520 = vsub.f32 %v518, %v519
      %v521 = vand.u32 %v520, 4294901760
      %522 = vmatpush1.msra.mxu0 %v521
      %v523 = vand.u32 %v154, 4294901760
      %v524 = vsub.f32 %v154, %v523
      %v525 = vand.u32 %v524, 4294901760
      %v526 = vsub.f32 %v524, %v525
      %v527 = vand.u32 %v526, 4294901760
      %528 = vmatprep.subr.mxu0 %v527
      %v529 = vand.u32 %v153, 4294901760
      %v530 = vsub.f32 %v153, %v529
      %v531 = vand.u32 %v530, 4294901760
      %v532 = vsub.f32 %v530, %v531
      %v533 = vand.u32 %v532, 4294901760
      %534 = vmatpush1.msra.mxu0 %v533
      %v535 = vand.u32 %v156, 4294901760
      %v536 = vsub.f32 %v156, %v535
      %v537 = vand.u32 %v536, 4294901760
      %v538 = vsub.f32 %v536, %v537
      %v539 = vand.u32 %v538, 4294901760
      %540 = vmatprep.subr.mxu0 %v539
      %v541 = vand.u32 %v155, 4294901760
      %v542 = vsub.f32 %v155, %v541
      %v543 = vand.u32 %v542, 4294901760
      %v544 = vsub.f32 %v542, %v543
      %v545 = vand.u32 %v544, 4294901760
      %546 = vmatpush1.msra.mxu0 %v545
      %v547 = vand.u32 %v158, 4294901760
      %v548 = vsub.f32 %v158, %v547
      %v549 = vand.u32 %v548, 4294901760
      %v550 = vsub.f32 %v548, %v549
      %v551 = vand.u32 %v550, 4294901760
      %552 = vmatprep.subr.mxu0 %v551
      %v553 = vand.u32 %v157, 4294901760
      %v554 = vsub.f32 %v157, %v553
      %v555 = vand.u32 %v554, 4294901760
      %v556 = vsub.f32 %v554, %v555
      %v557 = vand.u32 %v556, 4294901760
      %558 = vmatpush1.msra.mxu0 %v557
      %v559 = vand.u32 %v160, 4294901760
      %v560 = vsub.f32 %v160, %v559
      %v561 = vand.u32 %v560, 4294901760
      %v562 = vsub.f32 %v560, %v561
      %v563 = vand.u32 %v562, 4294901760
      %564 = vmatprep.subr.mxu0 %v563
      %v565 = vand.u32 %v159, 4294901760
      %v566 = vsub.f32 %v159, %v565
      %v567 = vand.u32 %v566, 4294901760
      %v568 = vsub.f32 %v566, %v567
      %v569 = vand.u32 %v568, 4294901760
      %570 = vmatpush1.msra.mxu0 %v569
      %v571 = vand.u32 %v162, 4294901760
      %v572 = vsub.f32 %v162, %v571
      %v573 = vand.u32 %v572, 4294901760
      %v574 = vsub.f32 %v572, %v573
      %v575 = vand.u32 %v574, 4294901760
      %576 = vmatprep.subr.mxu0 %v575
      %v577 = vand.u32 %v161, 4294901760
      %v578 = vsub.f32 %v161, %v577
      %v579 = vand.u32 %v578, 4294901760
      %v580 = vsub.f32 %v578, %v579
      %v581 = vand.u32 %v580, 4294901760
      %582 = vmatpush1.msra.mxu0 %v581
      %v583 = vand.u32 %v164, 4294901760
      %v584 = vsub.f32 %v164, %v583
      %v585 = vand.u32 %v584, 4294901760
      %v586 = vsub.f32 %v584, %v585
      %v587 = vand.u32 %v586, 4294901760
      %588 = vmatprep.subr.mxu0 %v587
      %v589 = vand.u32 %v163, 4294901760
      %v590 = vsub.f32 %v163, %v589
      %v591 = vand.u32 %v590, 4294901760
      %v592 = vsub.f32 %v590, %v591
      %v593 = vand.u32 %v592, 4294901760
      %594 = vmatpush1.msra.mxu0 %v593
      %v595 = vand.u32 %v166, 4294901760
      %v596 = vsub.f32 %v166, %v595
      %v597 = vand.u32 %v596, 4294901760
      %v598 = vsub.f32 %v596, %v597
      %v599 = vand.u32 %v598, 4294901760
      %600 = vmatprep.subr.mxu0 %v599
      %v601 = vand.u32 %v165, 4294901760
      %v602 = vsub.f32 %v165, %v601
      %v603 = vand.u32 %v602, 4294901760
      %v604 = vsub.f32 %v602, %v603
      %v605 = vand.u32 %v604, 4294901760
      %606 = vmatpush1.msra.mxu0 %v605
      %v607 = vand.u32 %v168, 4294901760
      %v608 = vsub.f32 %v168, %v607
      %v609 = vand.u32 %v608, 4294901760
      %v610 = vsub.f32 %v608, %v609
      %v611 = vand.u32 %v610, 4294901760
      %612 = vmatprep.subr.mxu0 %v611
      %v613 = vand.u32 %v167, 4294901760
      %v614 = vsub.f32 %v167, %v613
      %v615 = vand.u32 %v614, 4294901760
      %v616 = vsub.f32 %v614, %v615
      %v617 = vand.u32 %v616, 4294901760
      %618 = vmatpush1.msra.mxu0 %v617
      %v619 = vand.u32 %v170, 4294901760
      %v620 = vsub.f32 %v170, %v619
      %v621 = vand.u32 %v620, 4294901760
      %v622 = vsub.f32 %v620, %v621
      %v623 = vand.u32 %v622, 4294901760
      %624 = vmatprep.subr.mxu0 %v623
      %v625 = vand.u32 %v169, 4294901760
      %v626 = vsub.f32 %v169, %v625
      %v627 = vand.u32 %v626, 4294901760
      %v628 = vsub.f32 %v626, %v627
      %v629 = vand.u32 %v628, 4294901760
      %630 = vmatpush1.msra.mxu0 %v629
      %v631 = vand.u32 %v172, 4294901760
      %v632 = vsub.f32 %v172, %v631
      %v633 = vand.u32 %v632, 4294901760
      %v634 = vsub.f32 %v632, %v633
      %v635 = vand.u32 %v634, 4294901760
      %636 = vmatprep.subr.mxu0 %v635
      %v637 = vand.u32 %v171, 4294901760
      %v638 = vsub.f32 %v171, %v637
      %v639 = vand.u32 %v638, 4294901760
      %v640 = vsub.f32 %v638, %v639
      %v641 = vand.u32 %v640, 4294901760
      %642 = vmatpush1.msra.mxu0 %v641
      %v643 = vand.u32 %v174, 4294901760
      %v644 = vsub.f32 %v174, %v643
      %v645 = vand.u32 %v644, 4294901760
      %v646 = vsub.f32 %v644, %v645
      %v647 = vand.u32 %v646, 4294901760
      %648 = vmatprep.subr.mxu0 %v647
      %v649 = vand.u32 %v173, 4294901760
      %v650 = vsub.f32 %v173, %v649
      %v651 = vand.u32 %v650, 4294901760
      %v652 = vsub.f32 %v650, %v651
      %v653 = vand.u32 %v652, 4294901760
      %654 = vmatpush1.msra.mxu0 %v653
      %v655 = vand.u32 %v176, 4294901760
      %v656 = vsub.f32 %v176, %v655
      %v657 = vand.u32 %v656, 4294901760
      %v658 = vsub.f32 %v656, %v657
      %v659 = vand.u32 %v658, 4294901760
      %660 = vmatprep.subr.mxu0 %v659
      %v661 = vand.u32 %v175, 4294901760
      %v662 = vsub.f32 %v175, %v661
      %v663 = vand.u32 %v662, 4294901760
      %v664 = vsub.f32 %v662, %v663
      %v665 = vand.u32 %v664, 4294901760
      %666 = vmatpush1.msra.mxu0 %v665
      %v667 = vand.u32 %v178, 4294901760
      %v668 = vsub.f32 %v178, %v667
      %v669 = vand.u32 %v668, 4294901760
      %v670 = vsub.f32 %v668, %v669
      %v671 = vand.u32 %v670, 4294901760
      %672 = vmatprep.subr.mxu0 %v671
      %v673 = vand.u32 %v177, 4294901760
      %v674 = vsub.f32 %v177, %v673
      %v675 = vand.u32 %v674, 4294901760
      %v676 = vsub.f32 %v674, %v675
      %v677 = vand.u32 %v676, 4294901760
      %678 = vmatpush1.msra.mxu0 %v677
      %v679 = vand.u32 %v180, 4294901760
      %v680 = vsub.f32 %v180, %v679
      %v681 = vand.u32 %v680, 4294901760
      %v682 = vsub.f32 %v680, %v681
      %v683 = vand.u32 %v682, 4294901760
      %684 = vmatprep.subr.mxu0 %v683
      %v685 = vand.u32 %v179, 4294901760
      %v686 = vsub.f32 %v179, %v685
      %v687 = vand.u32 %v686, 4294901760
      %v688 = vsub.f32 %v686, %v687
      %v689 = vand.u32 %v688, 4294901760
      %690 = vmatpush1.msra.mxu0 %v689
      %v691 = vand.u32 %v182, 4294901760
      %v692 = vsub.f32 %v182, %v691
      %v693 = vand.u32 %v692, 4294901760
      %v694 = vsub.f32 %v692, %v693
      %v695 = vand.u32 %v694, 4294901760
      %696 = vmatprep.subr.mxu0 %v695
      %v697 = vand.u32 %v181, 4294901760
      %v698 = vsub.f32 %v181, %v697
      %v699 = vand.u32 %v698, 4294901760
      %v700 = vsub.f32 %v698, %v699
      %v701 = vand.u32 %v700, 4294901760
      %702 = vmatpush1.msra.mxu0 %v701
      %v703 = vand.u32 %v184, 4294901760
      %v704 = vsub.f32 %v184, %v703
      %v705 = vand.u32 %v704, 4294901760
      %v706 = vsub.f32 %v704, %v705
      %v707 = vand.u32 %v706, 4294901760
      %708 = vmatprep.subr.mxu0 %v707
      %v709 = vand.u32 %v183, 4294901760
      %v710 = vsub.f32 %v183, %v709
      %v711 = vand.u32 %v710, 4294901760
      %v712 = vsub.f32 %v710, %v711
      %v713 = vand.u32 %v712, 4294901760
      %714 = vmatpush1.msra.mxu0 %v713
      %v715 = vand.u32 %v186, 4294901760
      %v716 = vsub.f32 %v186, %v715
      %v717 = vand.u32 %v716, 4294901760
      %v718 = vsub.f32 %v716, %v717
      %v719 = vand.u32 %v718, 4294901760
      %720 = vmatprep.subr.mxu0 %v719
      %v721 = vand.u32 %v185, 4294901760
      %v722 = vsub.f32 %v185, %v721
      %v723 = vand.u32 %v722, 4294901760
      %v724 = vsub.f32 %v722, %v723
      %v725 = vand.u32 %v724, 4294901760
      %726 = vmatpush1.msra.mxu0 %v725
      %v727 = vand.u32 %v195, 4294901760
      %728 = vmatprep.mubr.f32.mxu0 %v727
      %v729 = vand.u32 %v194, 4294901760
      %730 = vmatmul.mubr.f32.gmra.mrb[0].mxu0 %v729
      %v731 = vpop.f32.mrb[0].mxu0
      %v732 = vadd.f32 %v339, %v731
      %v733 = vpop.f32.mrb[0].mxu0
      %v734 = vadd.f32 %v341, %v733
      %735 = vdwg.mxu0
      %v736 = vand.u32 %v124, 4294901760
      %v737 = vsub.f32 %v124, %v736
      %738 = vmatprep.subr.mxu0 %v737
      %v739 = vand.u32 %v123, 4294901760
      %v740 = vsub.f32 %v123, %v739
      %741 = vmatpush1.msra.mxu0 %v740
      %v742 = vand.u32 %v126, 4294901760
      %v743 = vsub.f32 %v126, %v742
      %744 = vmatprep.subr.mxu0 %v743
      %v745 = vand.u32 %v125, 4294901760
      %v746 = vsub.f32 %v125, %v745
      %747 = vmatpush1.msra.mxu0 %v746
      %v748 = vand.u32 %v128, 4294901760
      %v749 = vsub.f32 %v128, %v748
      %750 = vmatprep.subr.mxu0 %v749
      %v751 = vand.u32 %v127, 4294901760
      %v752 = vsub.f32 %v127, %v751
      %753 = vmatpush1.msra.mxu0 %v752
      %v754 = vand.u32 %v130, 4294901760
      %v755 = vsub.f32 %v130, %v754
      %756 = vmatprep.subr.mxu0 %v755
      %v757 = vand.u32 %v129, 4294901760
      %v758 = vsub.f32 %v129, %v757
      %759 = vmatpush1.msra.mxu0 %v758
      %v760 = vand.u32 %v132, 4294901760
      %v761 = vsub.f32 %v132, %v760
      %762 = vmatprep.subr.mxu0 %v761
      %v763 = vand.u32 %v131, 4294901760
      %v764 = vsub.f32 %v131, %v763
      %765 = vmatpush1.msra.mxu0 %v764
      %v766 = vand.u32 %v134, 4294901760
      %v767 = vsub.f32 %v134, %v766
      %768 = vmatprep.subr.mxu0 %v767
      %v769 = vand.u32 %v133, 4294901760
      %v770 = vsub.f32 %v133, %v769
      %771 = vmatpush1.msra.mxu0 %v770
      %v772 = vand.u32 %v136, 4294901760
      %v773 = vsub.f32 %v136, %v772
      %774 = vmatprep.subr.mxu0 %v773
      %v775 = vand.u32 %v135, 4294901760
      %v776 = vsub.f32 %v135, %v775
      %777 = vmatpush1.msra.mxu0 %v776
      %v778 = vand.u32 %v138, 4294901760
      %v779 = vsub.f32 %v138, %v778
      %780 = vmatprep.subr.mxu0 %v779
      %v781 = vand.u32 %v137, 4294901760
      %v782 = vsub.f32 %v137, %v781
      %783 = vmatpush1.msra.mxu0 %v782
      %v784 = vand.u32 %v140, 4294901760
      %v785 = vsub.f32 %v140, %v784
      %786 = vmatprep.subr.mxu0 %v785
      %v787 = vand.u32 %v139, 4294901760
      %v788 = vsub.f32 %v139, %v787
      %789 = vmatpush1.msra.mxu0 %v788
      %v790 = vand.u32 %v142, 4294901760
      %v791 = vsub.f32 %v142, %v790
      %792 = vmatprep.subr.mxu0 %v791
      %v793 = vand.u32 %v141, 4294901760
      %v794 = vsub.f32 %v141, %v793
      %795 = vmatpush1.msra.mxu0 %v794
      %v796 = vand.u32 %v144, 4294901760
      %v797 = vsub.f32 %v144, %v796
      %798 = vmatprep.subr.mxu0 %v797
      %v799 = vand.u32 %v143, 4294901760
      %v800 = vsub.f32 %v143, %v799
      %801 = vmatpush1.msra.mxu0 %v800
      %v802 = vand.u32 %v146, 4294901760
      %v803 = vsub.f32 %v146, %v802
      %804 = vmatprep.subr.mxu0 %v803
      %v805 = vand.u32 %v145, 4294901760
      %v806 = vsub.f32 %v145, %v805
      %807 = vmatpush1.msra.mxu0 %v806
      %v808 = vand.u32 %v148, 4294901760
      %v809 = vsub.f32 %v148, %v808
      %810 = vmatprep.subr.mxu0 %v809
      %v811 = vand.u32 %v147, 4294901760
      %v812 = vsub.f32 %v147, %v811
      %813 = vmatpush1.msra.mxu0 %v812
      %v814 = vand.u32 %v150, 4294901760
      %v815 = vsub.f32 %v150, %v814
      %816 = vmatprep.subr.mxu0 %v815
      %v817 = vand.u32 %v149, 4294901760
      %v818 = vsub.f32 %v149, %v817
      %819 = vmatpush1.msra.mxu0 %v818
      %v820 = vand.u32 %v152, 4294901760
      %v821 = vsub.f32 %v152, %v820
      %822 = vmatprep.subr.mxu0 %v821
      %v823 = vand.u32 %v151, 4294901760
      %v824 = vsub.f32 %v151, %v823
      %825 = vmatpush1.msra.mxu0 %v824
      %v826 = vand.u32 %v154, 4294901760
      %v827 = vsub.f32 %v154, %v826
      %828 = vmatprep.subr.mxu0 %v827
      %v829 = vand.u32 %v153, 4294901760
      %v830 = vsub.f32 %v153, %v829
      %831 = vmatpush1.msra.mxu0 %v830
      %v832 = vand.u32 %v156, 4294901760
      %v833 = vsub.f32 %v156, %v832
      %834 = vmatprep.subr.mxu0 %v833
      %v835 = vand.u32 %v155, 4294901760
      %v836 = vsub.f32 %v155, %v835
      %837 = vmatpush1.msra.mxu0 %v836
      %v838 = vand.u32 %v158, 4294901760
      %v839 = vsub.f32 %v158, %v838
      %840 = vmatprep.subr.mxu0 %v839
      %v841 = vand.u32 %v157, 4294901760
      %v842 = vsub.f32 %v157, %v841
      %843 = vmatpush1.msra.mxu0 %v842
      %v844 = vand.u32 %v160, 4294901760
      %v845 = vsub.f32 %v160, %v844
      %846 = vmatprep.subr.mxu0 %v845
      %v847 = vand.u32 %v159, 4294901760
      %v848 = vsub.f32 %v159, %v847
      %849 = vmatpush1.msra.mxu0 %v848
      %v850 = vand.u32 %v162, 4294901760
      %v851 = vsub.f32 %v162, %v850
      %852 = vmatprep.subr.mxu0 %v851
      %v853 = vand.u32 %v161, 4294901760
      %v854 = vsub.f32 %v161, %v853
      %855 = vmatpush1.msra.mxu0 %v854
      %v856 = vand.u32 %v164, 4294901760
      %v857 = vsub.f32 %v164, %v856
      %858 = vmatprep.subr.mxu0 %v857
      %v859 = vand.u32 %v163, 4294901760
      %v860 = vsub.f32 %v163, %v859
      %861 = vmatpush1.msra.mxu0 %v860
      %v862 = vand.u32 %v166, 4294901760
      %v863 = vsub.f32 %v166, %v862
      %864 = vmatprep.subr.mxu0 %v863
      %v865 = vand.u32 %v165, 4294901760
      %v866 = vsub.f32 %v165, %v865
      %867 = vmatpush1.msra.mxu0 %v866
      %v868 = vand.u32 %v168, 4294901760
      %v869 = vsub.f32 %v168, %v868
      %870 = vmatprep.subr.mxu0 %v869
      %v871 = vand.u32 %v167, 4294901760
      %v872 = vsub.f32 %v167, %v871
      %873 = vmatpush1.msra.mxu0 %v872
      %v874 = vand.u32 %v170, 4294901760
      %v875 = vsub.f32 %v170, %v874
      %876 = vmatprep.subr.mxu0 %v875
      %v877 = vand.u32 %v169, 4294901760
      %v878 = vsub.f32 %v169, %v877
      %879 = vmatpush1.msra.mxu0 %v878
      %v880 = vand.u32 %v172, 4294901760
      %v881 = vsub.f32 %v172, %v880
      %882 = vmatprep.subr.mxu0 %v881
      %v883 = vand.u32 %v171, 4294901760
      %v884 = vsub.f32 %v171, %v883
      %885 = vmatpush1.msra.mxu0 %v884
      %v886 = vand.u32 %v174, 4294901760
      %v887 = vsub.f32 %v174, %v886
      %888 = vmatprep.subr.mxu0 %v887
      %v889 = vand.u32 %v173, 4294901760
      %v890 = vsub.f32 %v173, %v889
      %891 = vmatpush1.msra.mxu0 %v890
      %v892 = vand.u32 %v176, 4294901760
      %v893 = vsub.f32 %v176, %v892
      %894 = vmatprep.subr.mxu0 %v893
      %v895 = vand.u32 %v175, 4294901760
      %v896 = vsub.f32 %v175, %v895
      %897 = vmatpush1.msra.mxu0 %v896
      %v898 = vand.u32 %v178, 4294901760
      %v899 = vsub.f32 %v178, %v898
      %900 = vmatprep.subr.mxu0 %v899
      %v901 = vand.u32 %v177, 4294901760
      %v902 = vsub.f32 %v177, %v901
      %903 = vmatpush1.msra.mxu0 %v902
      %v904 = vand.u32 %v180, 4294901760
      %v905 = vsub.f32 %v180, %v904
      %906 = vmatprep.subr.mxu0 %v905
      %v907 = vand.u32 %v179, 4294901760
      %v908 = vsub.f32 %v179, %v907
      %909 = vmatpush1.msra.mxu0 %v908
      %v910 = vand.u32 %v182, 4294901760
      %v911 = vsub.f32 %v182, %v910
      %912 = vmatprep.subr.mxu0 %v911
      %v913 = vand.u32 %v181, 4294901760
      %v914 = vsub.f32 %v181, %v913
      %915 = vmatpush1.msra.mxu0 %v914
      %v916 = vand.u32 %v184, 4294901760
      %v917 = vsub.f32 %v184, %v916
      %918 = vmatprep.subr.mxu0 %v917
      %v919 = vand.u32 %v183, 4294901760
      %v920 = vsub.f32 %v183, %v919
      %921 = vmatpush1.msra.mxu0 %v920
      %v922 = vand.u32 %v186, 4294901760
      %v923 = vsub.f32 %v186, %v922
      %924 = vmatprep.subr.mxu0 %v923
      %v925 = vand.u32 %v185, 4294901760
      %v926 = vsub.f32 %v185, %v925
      %927 = vmatpush1.msra.mxu0 %v926
      %v928 = vand.u32 %v195, 4294901760
      %v929 = vsub.f32 %v195, %v928
      %930 = vmatprep.mubr.f32.mxu0 %v929
      %v931 = vand.u32 %v194, 4294901760
      %v932 = vsub.f32 %v194, %v931
      %933 = vmatmul.mubr.f32.gmra.mrb[0].mxu0 %v932
      %v934 = vpop.f32.mrb[0].mxu0
      %v935 = vadd.f32 %v732, %v934
      %v936 = vpop.f32.mrb[0].mxu0
      %v937 = vadd.f32 %v734, %v936
      %938 = vdwg.mxu0
      %v939 = vand.u32 %v124, 4294901760
      %940 = vmatprep.subr.mxu0 %v939
      %v941 = vand.u32 %v123, 4294901760
      %942 = vmatpush1.msra.mxu0 %v941
      %v943 = vand.u32 %v126, 4294901760
      %944 = vmatprep.subr.mxu0 %v943
      %v945 = vand.u32 %v125, 4294901760
      %946 = vmatpush1.msra.mxu0 %v945
      %v947 = vand.u32 %v128, 4294901760
      %948 = vmatprep.subr.mxu0 %v947
      %v949 = vand.u32 %v127, 4294901760
      %950 = vmatpush1.msra.mxu0 %v949
      %v951 = vand.u32 %v130, 4294901760
      %952 = vmatprep.subr.mxu0 %v951
      %v953 = vand.u32 %v129, 4294901760
      %954 = vmatpush1.msra.mxu0 %v953
      %v955 = vand.u32 %v132, 4294901760
      %956 = vmatprep.subr.mxu0 %v955
      %v957 = vand.u32 %v131, 4294901760
      %958 = vmatpush1.msra.mxu0 %v957
      %v959 = vand.u32 %v134, 4294901760
      %960 = vmatprep.subr.mxu0 %v959
      %v961 = vand.u32 %v133, 4294901760
      %962 = vmatpush1.msra.mxu0 %v961
      %v963 = vand.u32 %v136, 4294901760
      %964 = vmatprep.subr.mxu0 %v963
      %v965 = vand.u32 %v135, 4294901760
      %966 = vmatpush1.msra.mxu0 %v965
      %v967 = vand.u32 %v138, 4294901760
      %968 = vmatprep.subr.mxu0 %v967
      %v969 = vand.u32 %v137, 4294901760
      %970 = vmatpush1.msra.mxu0 %v969
      %v971 = vand.u32 %v140, 4294901760
      %972 = vmatprep.subr.mxu0 %v971
      %v973 = vand.u32 %v139, 4294901760
      %974 = vmatpush1.msra.mxu0 %v973
      %v975 = vand.u32 %v142, 4294901760
      %976 = vmatprep.subr.mxu0 %v975
      %v977 = vand.u32 %v141, 4294901760
      %978 = vmatpush1.msra.mxu0 %v977
      %v979 = vand.u32 %v144, 4294901760
      %980 = vmatprep.subr.mxu0 %v979
      %v981 = vand.u32 %v143, 4294901760
      %982 = vmatpush1.msra.mxu0 %v981
      %v983 = vand.u32 %v146, 4294901760
      %984 = vmatprep.subr.mxu0 %v983
      %v985 = vand.u32 %v145, 4294901760
      %986 = vmatpush1.msra.mxu0 %v985
      %v987 = vand.u32 %v148, 4294901760
      %988 = vmatprep.subr.mxu0 %v987
      %v989 = vand.u32 %v147, 4294901760
      %990 = vmatpush1.msra.mxu0 %v989
      %v991 = vand.u32 %v150, 4294901760
      %992 = vmatprep.subr.mxu0 %v991
      %v993 = vand.u32 %v149, 4294901760
      %994 = vmatpush1.msra.mxu0 %v993
      %v995 = vand.u32 %v152, 4294901760
      %996 = vmatprep.subr.mxu0 %v995
      %v997 = vand.u32 %v151, 4294901760
      %998 = vmatpush1.msra.mxu0 %v997
      %v999 = vand.u32 %v154, 4294901760
      %1000 = vmatprep.subr.mxu0 %v999
      %v1001 = vand.u32 %v153, 4294901760
      %1002 = vmatpush1.msra.mxu0 %v1001
      %v1003 = vand.u32 %v156, 4294901760
      %1004 = vmatprep.subr.mxu0 %v1003
      %v1005 = vand.u32 %v155, 4294901760
      %1006 = vmatpush1.msra.mxu0 %v1005
      %v1007 = vand.u32 %v158, 4294901760
      %1008 = vmatprep.subr.mxu0 %v1007
      %v1009 = vand.u32 %v157, 4294901760
      %1010 = vmatpush1.msra.mxu0 %v1009
      %v1011 = vand.u32 %v160, 4294901760
      %1012 = vmatprep.subr.mxu0 %v1011
      %v1013 = vand.u32 %v159, 4294901760
      %1014 = vmatpush1.msra.mxu0 %v1013
      %v1015 = vand.u32 %v162, 4294901760
      %1016 = vmatprep.subr.mxu0 %v1015
      %v1017 = vand.u32 %v161, 4294901760
      %1018 = vmatpush1.msra.mxu0 %v1017
      %v1019 = vand.u32 %v164, 4294901760
      %1020 = vmatprep.subr.mxu0 %v1019
      %v1021 = vand.u32 %v163, 4294901760
      %1022 = vmatpush1.msra.mxu0 %v1021
      %v1023 = vand.u32 %v166, 4294901760
      %1024 = vmatprep.subr.mxu0 %v1023
      %v1025 = vand.u32 %v165, 4294901760
      %1026 = vmatpush1.msra.mxu0 %v1025
      %v1027 = vand.u32 %v168, 4294901760
      %1028 = vmatprep.subr.mxu0 %v1027
      %v1029 = vand.u32 %v167, 4294901760
      %1030 = vmatpush1.msra.mxu0 %v1029
      %v1031 = vand.u32 %v170, 4294901760
      %1032 = vmatprep.subr.mxu0 %v1031
      %v1033 = vand.u32 %v169, 4294901760
      %1034 = vmatpush1.msra.mxu0 %v1033
      %v1035 = vand.u32 %v172, 4294901760
      %1036 = vmatprep.subr.mxu0 %v1035
      %v1037 = vand.u32 %v171, 4294901760
      %1038 = vmatpush1.msra.mxu0 %v1037
      %v1039 = vand.u32 %v174, 4294901760
      %1040 = vmatprep.subr.mxu0 %v1039
      %v1041 = vand.u32 %v173, 4294901760
      %1042 = vmatpush1.msra.mxu0 %v1041
      %v1043 = vand.u32 %v176, 4294901760
      %1044 = vmatprep.subr.mxu0 %v1043
      %v1045 = vand.u32 %v175, 4294901760
      %1046 = vmatpush1.msra.mxu0 %v1045
      %v1047 = vand.u32 %v178, 4294901760
      %1048 = vmatprep.subr.mxu0 %v1047
      %v1049 = vand.u32 %v177, 4294901760
      %1050 = vmatpush1.msra.mxu0 %v1049
      %v1051 = vand.u32 %v180, 4294901760
      %1052 = vmatprep.subr.mxu0 %v1051
      %v1053 = vand.u32 %v179, 4294901760
      %1054 = vmatpush1.msra.mxu0 %v1053
      %v1055 = vand.u32 %v182, 4294901760
      %1056 = vmatprep.subr.mxu0 %v1055
      %v1057 = vand.u32 %v181, 4294901760
      %1058 = vmatpush1.msra.mxu0 %v1057
      %v1059 = vand.u32 %v184, 4294901760
      %1060 = vmatprep.subr.mxu0 %v1059
      %v1061 = vand.u32 %v183, 4294901760
      %1062 = vmatpush1.msra.mxu0 %v1061
      %v1063 = vand.u32 %v186, 4294901760
      %1064 = vmatprep.subr.mxu0 %v1063
      %v1065 = vand.u32 %v185, 4294901760
      %1066 = vmatpush1.msra.mxu0 %v1065
      %v1067 = vand.u32 %v195, 4294901760
      %v1068 = vsub.f32 %v195, %v1067
      %v1069 = vand.u32 %v1068, 4294901760
      %1070 = vmatprep.mubr.f32.mxu0 %v1069
      %v1071 = vand.u32 %v194, 4294901760
      %v1072 = vsub.f32 %v194, %v1071
      %v1073 = vand.u32 %v1072, 4294901760
      %1074 = vmatmul.mubr.f32.gmra.mrb[0].mxu0 %v1073
      %v1075 = vpop.f32.mrb[0].mxu0
      %v1076 = vadd.f32 %v935, %v1075
      %v1077 = vpop.f32.mrb[0].mxu0
      %v1078 = vadd.f32 %v937, %v1077
      %1079 = vdwg.mxu0
      %v1080 = vand.u32 %v124, 4294901760
      %v1081 = vsub.f32 %v124, %v1080
      %v1082 = vand.u32 %v1081, 4294901760
      %1083 = vmatprep.subr.mxu0 %v1082
      %v1084 = vand.u32 %v123, 4294901760
      %v1085 = vsub.f32 %v123, %v1084
      %v1086 = vand.u32 %v1085, 4294901760
      %1087 = vmatpush1.msra.mxu0 %v1086
      %v1088 = vand.u32 %v126, 4294901760
      %v1089 = vsub.f32 %v126, %v1088
      %v1090 = vand.u32 %v1089, 4294901760
      %1091 = vmatprep.subr.mxu0 %v1090
      %v1092 = vand.u32 %v125, 4294901760
      %v1093 = vsub.f32 %v125, %v1092
      %v1094 = vand.u32 %v1093, 4294901760
      %1095 = vmatpush1.msra.mxu0 %v1094
      %v1096 = vand.u32 %v128, 4294901760
      %v1097 = vsub.f32 %v128, %v1096
      %v1098 = vand.u32 %v1097, 4294901760
      %1099 = vmatprep.subr.mxu0 %v1098
      %v1100 = vand.u32 %v127, 4294901760
      %v1101 = vsub.f32 %v127, %v1100
      %v1102 = vand.u32 %v1101, 4294901760
      %1103 = vmatpush1.msra.mxu0 %v1102
      %v1104 = vand.u32 %v130, 4294901760
      %v1105 = vsub.f32 %v130, %v1104
      %v1106 = vand.u32 %v1105, 4294901760
      %1107 = vmatprep.subr.mxu0 %v1106
      %v1108 = vand.u32 %v129, 4294901760
      %v1109 = vsub.f32 %v129, %v1108
      %v1110 = vand.u32 %v1109, 4294901760
      %1111 = vmatpush1.msra.mxu0 %v1110
      %v1112 = vand.u32 %v132, 4294901760
      %v1113 = vsub.f32 %v132, %v1112
      %v1114 = vand.u32 %v1113, 4294901760
      %1115 = vmatprep.subr.mxu0 %v1114
      %v1116 = vand.u32 %v131, 4294901760
      %v1117 = vsub.f32 %v131, %v1116
      %v1118 = vand.u32 %v1117, 4294901760
      %1119 = vmatpush1.msra.mxu0 %v1118
      %v1120 = vand.u32 %v134, 4294901760
      %v1121 = vsub.f32 %v134, %v1120
      %v1122 = vand.u32 %v1121, 4294901760
      %1123 = vmatprep.subr.mxu0 %v1122
      %v1124 = vand.u32 %v133, 4294901760
      %v1125 = vsub.f32 %v133, %v1124
      %v1126 = vand.u32 %v1125, 4294901760
      %1127 = vmatpush1.msra.mxu0 %v1126
      %v1128 = vand.u32 %v136, 4294901760
      %v1129 = vsub.f32 %v136, %v1128
      %v1130 = vand.u32 %v1129, 4294901760
      %1131 = vmatprep.subr.mxu0 %v1130
      %v1132 = vand.u32 %v135, 4294901760
      %v1133 = vsub.f32 %v135, %v1132
      %v1134 = vand.u32 %v1133, 4294901760
      %1135 = vmatpush1.msra.mxu0 %v1134
      %v1136 = vand.u32 %v138, 4294901760
      %v1137 = vsub.f32 %v138, %v1136
      %v1138 = vand.u32 %v1137, 4294901760
      %1139 = vmatprep.subr.mxu0 %v1138
      %v1140 = vand.u32 %v137, 4294901760
      %v1141 = vsub.f32 %v137, %v1140
      %v1142 = vand.u32 %v1141, 4294901760
      %1143 = vmatpush1.msra.mxu0 %v1142
      %v1144 = vand.u32 %v140, 4294901760
      %v1145 = vsub.f32 %v140, %v1144
      %v1146 = vand.u32 %v1145, 4294901760
      %1147 = vmatprep.subr.mxu0 %v1146
      %v1148 = vand.u32 %v139, 4294901760
      %v1149 = vsub.f32 %v139, %v1148
      %v1150 = vand.u32 %v1149, 4294901760
      %1151 = vmatpush1.msra.mxu0 %v1150
      %v1152 = vand.u32 %v142, 4294901760
      %v1153 = vsub.f32 %v142, %v1152
      %v1154 = vand.u32 %v1153, 4294901760
      %1155 = vmatprep.subr.mxu0 %v1154
      %v1156 = vand.u32 %v141, 4294901760
      %v1157 = vsub.f32 %v141, %v1156
      %v1158 = vand.u32 %v1157, 4294901760
      %1159 = vmatpush1.msra.mxu0 %v1158
      %v1160 = vand.u32 %v144, 4294901760
      %v1161 = vsub.f32 %v144, %v1160
      %v1162 = vand.u32 %v1161, 4294901760
      %1163 = vmatprep.subr.mxu0 %v1162
      %v1164 = vand.u32 %v143, 4294901760
      %v1165 = vsub.f32 %v143, %v1164
      %v1166 = vand.u32 %v1165, 4294901760
      %1167 = vmatpush1.msra.mxu0 %v1166
      %v1168 = vand.u32 %v146, 4294901760
      %v1169 = vsub.f32 %v146, %v1168
      %v1170 = vand.u32 %v1169, 4294901760
      %1171 = vmatprep.subr.mxu0 %v1170
      %v1172 = vand.u32 %v145, 4294901760
      %v1173 = vsub.f32 %v145, %v1172
      %v1174 = vand.u32 %v1173, 4294901760
      %1175 = vmatpush1.msra.mxu0 %v1174
      %v1176 = vand.u32 %v148, 4294901760
      %v1177 = vsub.f32 %v148, %v1176
      %v1178 = vand.u32 %v1177, 4294901760
      %1179 = vmatprep.subr.mxu0 %v1178
      %v1180 = vand.u32 %v147, 4294901760
      %v1181 = vsub.f32 %v147, %v1180
      %v1182 = vand.u32 %v1181, 4294901760
      %1183 = vmatpush1.msra.mxu0 %v1182
      %v1184 = vand.u32 %v150, 4294901760
      %v1185 = vsub.f32 %v150, %v1184
      %v1186 = vand.u32 %v1185, 4294901760
      %1187 = vmatprep.subr.mxu0 %v1186
      %v1188 = vand.u32 %v149, 4294901760
      %v1189 = vsub.f32 %v149, %v1188
      %v1190 = vand.u32 %v1189, 4294901760
      %1191 = vmatpush1.msra.mxu0 %v1190
      %v1192 = vand.u32 %v152, 4294901760
      %v1193 = vsub.f32 %v152, %v1192
      %v1194 = vand.u32 %v1193, 4294901760
      %1195 = vmatprep.subr.mxu0 %v1194
      %v1196 = vand.u32 %v151, 4294901760
      %v1197 = vsub.f32 %v151, %v1196
      %v1198 = vand.u32 %v1197, 4294901760
      %1199 = vmatpush1.msra.mxu0 %v1198
      %v1200 = vand.u32 %v154, 4294901760
      %v1201 = vsub.f32 %v154, %v1200
      %v1202 = vand.u32 %v1201, 4294901760
      %1203 = vmatprep.subr.mxu0 %v1202
      %v1204 = vand.u32 %v153, 4294901760
      %v1205 = vsub.f32 %v153, %v1204
      %v1206 = vand.u32 %v1205, 4294901760
      %1207 = vmatpush1.msra.mxu0 %v1206
      %v1208 = vand.u32 %v156, 4294901760
      %v1209 = vsub.f32 %v156, %v1208
      %v1210 = vand.u32 %v1209, 4294901760
      %1211 = vmatprep.subr.mxu0 %v1210
      %v1212 = vand.u32 %v155, 4294901760
      %v1213 = vsub.f32 %v155, %v1212
      %v1214 = vand.u32 %v1213, 4294901760
      %1215 = vmatpush1.msra.mxu0 %v1214
      %v1216 = vand.u32 %v158, 4294901760
      %v1217 = vsub.f32 %v158, %v1216
      %v1218 = vand.u32 %v1217, 4294901760
      %1219 = vmatprep.subr.mxu0 %v1218
      %v1220 = vand.u32 %v157, 4294901760
      %v1221 = vsub.f32 %v157, %v1220
      %v1222 = vand.u32 %v1221, 4294901760
      %1223 = vmatpush1.msra.mxu0 %v1222
      %v1224 = vand.u32 %v160, 4294901760
      %v1225 = vsub.f32 %v160, %v1224
      %v1226 = vand.u32 %v1225, 4294901760
      %1227 = vmatprep.subr.mxu0 %v1226
      %v1228 = vand.u32 %v159, 4294901760
      %v1229 = vsub.f32 %v159, %v1228
      %v1230 = vand.u32 %v1229, 4294901760
      %1231 = vmatpush1.msra.mxu0 %v1230
      %v1232 = vand.u32 %v162, 4294901760
      %v1233 = vsub.f32 %v162, %v1232
      %v1234 = vand.u32 %v1233, 4294901760
      %1235 = vmatprep.subr.mxu0 %v1234
      %v1236 = vand.u32 %v161, 4294901760
      %v1237 = vsub.f32 %v161, %v1236
      %v1238 = vand.u32 %v1237, 4294901760
      %1239 = vmatpush1.msra.mxu0 %v1238
      %v1240 = vand.u32 %v164, 4294901760
      %v1241 = vsub.f32 %v164, %v1240
      %v1242 = vand.u32 %v1241, 4294901760
      %1243 = vmatprep.subr.mxu0 %v1242
      %v1244 = vand.u32 %v163, 4294901760
      %v1245 = vsub.f32 %v163, %v1244
      %v1246 = vand.u32 %v1245, 4294901760
      %1247 = vmatpush1.msra.mxu0 %v1246
      %v1248 = vand.u32 %v166, 4294901760
      %v1249 = vsub.f32 %v166, %v1248
      %v1250 = vand.u32 %v1249, 4294901760
      %1251 = vmatprep.subr.mxu0 %v1250
      %v1252 = vand.u32 %v165, 4294901760
      %v1253 = vsub.f32 %v165, %v1252
      %v1254 = vand.u32 %v1253, 4294901760
      %1255 = vmatpush1.msra.mxu0 %v1254
      %v1256 = vand.u32 %v168, 4294901760
      %v1257 = vsub.f32 %v168, %v1256
      %v1258 = vand.u32 %v1257, 4294901760
      %1259 = vmatprep.subr.mxu0 %v1258
      %v1260 = vand.u32 %v167, 4294901760
      %v1261 = vsub.f32 %v167, %v1260
      %v1262 = vand.u32 %v1261, 4294901760
      %1263 = vmatpush1.msra.mxu0 %v1262
      %v1264 = vand.u32 %v170, 4294901760
      %v1265 = vsub.f32 %v170, %v1264
      %v1266 = vand.u32 %v1265, 4294901760
      %1267 = vmatprep.subr.mxu0 %v1266
      %v1268 = vand.u32 %v169, 4294901760
      %v1269 = vsub.f32 %v169, %v1268
      %v1270 = vand.u32 %v1269, 4294901760
      %1271 = vmatpush1.msra.mxu0 %v1270
      %v1272 = vand.u32 %v172, 4294901760
      %v1273 = vsub.f32 %v172, %v1272
      %v1274 = vand.u32 %v1273, 4294901760
      %1275 = vmatprep.subr.mxu0 %v1274
      %v1276 = vand.u32 %v171, 4294901760
      %v1277 = vsub.f32 %v171, %v1276
      %v1278 = vand.u32 %v1277, 4294901760
      %1279 = vmatpush1.msra.mxu0 %v1278
      %v1280 = vand.u32 %v174, 4294901760
      %v1281 = vsub.f32 %v174, %v1280
      %v1282 = vand.u32 %v1281, 4294901760
      %1283 = vmatprep.subr.mxu0 %v1282
      %v1284 = vand.u32 %v173, 4294901760
      %v1285 = vsub.f32 %v173, %v1284
      %v1286 = vand.u32 %v1285, 4294901760
      %1287 = vmatpush1.msra.mxu0 %v1286
      %v1288 = vand.u32 %v176, 4294901760
      %v1289 = vsub.f32 %v176, %v1288
      %v1290 = vand.u32 %v1289, 4294901760
      %1291 = vmatprep.subr.mxu0 %v1290
      %v1292 = vand.u32 %v175, 4294901760
      %v1293 = vsub.f32 %v175, %v1292
      %v1294 = vand.u32 %v1293, 4294901760
      %1295 = vmatpush1.msra.mxu0 %v1294
      %v1296 = vand.u32 %v178, 4294901760
      %v1297 = vsub.f32 %v178, %v1296
      %v1298 = vand.u32 %v1297, 4294901760
      %1299 = vmatprep.subr.mxu0 %v1298
      %v1300 = vand.u32 %v177, 4294901760
      %v1301 = vsub.f32 %v177, %v1300
      %v1302 = vand.u32 %v1301, 4294901760
      %1303 = vmatpush1.msra.mxu0 %v1302
      %v1304 = vand.u32 %v180, 4294901760
      %v1305 = vsub.f32 %v180, %v1304
      %v1306 = vand.u32 %v1305, 4294901760
      %1307 = vmatprep.subr.mxu0 %v1306
      %v1308 = vand.u32 %v179, 4294901760
      %v1309 = vsub.f32 %v179, %v1308
      %v1310 = vand.u32 %v1309, 4294901760
      %1311 = vmatpush1.msra.mxu0 %v1310
      %v1312 = vand.u32 %v182, 4294901760
      %v1313 = vsub.f32 %v182, %v1312
      %v1314 = vand.u32 %v1313, 4294901760
      %1315 = vmatprep.subr.mxu0 %v1314
      %v1316 = vand.u32 %v181, 4294901760
      %v1317 = vsub.f32 %v181, %v1316
      %v1318 = vand.u32 %v1317, 4294901760
      %1319 = vmatpush1.msra.mxu0 %v1318
      %v1320 = vand.u32 %v184, 4294901760
      %v1321 = vsub.f32 %v184, %v1320
      %v1322 = vand.u32 %v1321, 4294901760
      %1323 = vmatprep.subr.mxu0 %v1322
      %v1324 = vand.u32 %v183, 4294901760
      %v1325 = vsub.f32 %v183, %v1324
      %v1326 = vand.u32 %v1325, 4294901760
      %1327 = vmatpush1.msra.mxu0 %v1326
      %v1328 = vand.u32 %v186, 4294901760
      %v1329 = vsub.f32 %v186, %v1328
      %v1330 = vand.u32 %v1329, 4294901760
      %1331 = vmatprep.subr.mxu0 %v1330
      %v1332 = vand.u32 %v185, 4294901760
      %v1333 = vsub.f32 %v185, %v1332
      %v1334 = vand.u32 %v1333, 4294901760
      %1335 = vmatpush1.msra.mxu0 %v1334
      %v1336 = vand.u32 %v195, 4294901760
      %1337 = vmatprep.mubr.f32.mxu0 %v1336
      %v1338 = vand.u32 %v194, 4294901760
      %1339 = vmatmul.mubr.f32.gmra.mrb[0].mxu0 %v1338
      %v1340 = vpop.f32.mrb[0].mxu0
      %v1341 = vadd.f32 %v1076, %v1340
      %v1342 = vpop.f32.mrb[0].mxu0
      %v1343 = vadd.f32 %v1078, %v1342
      %1344 = vdwg.mxu0
      %v1345 = vand.u32 %v124, 4294901760
      %1346 = vmatprep.subr.mxu0 %v1345
      %v1347 = vand.u32 %v123, 4294901760
      %1348 = vmatpush1.msra.mxu0 %v1347
      %v1349 = vand.u32 %v126, 4294901760
      %1350 = vmatprep.subr.mxu0 %v1349
      %v1351 = vand.u32 %v125, 4294901760
      %1352 = vmatpush1.msra.mxu0 %v1351
      %v1353 = vand.u32 %v128, 4294901760
      %1354 = vmatprep.subr.mxu0 %v1353
      %v1355 = vand.u32 %v127, 4294901760
      %1356 = vmatpush1.msra.mxu0 %v1355
      %v1357 = vand.u32 %v130, 4294901760
      %1358 = vmatprep.subr.mxu0 %v1357
      %v1359 = vand.u32 %v129, 4294901760
      %1360 = vmatpush1.msra.mxu0 %v1359
      %v1361 = vand.u32 %v132, 4294901760
      %1362 = vmatprep.subr.mxu0 %v1361
      %v1363 = vand.u32 %v131, 4294901760
      %1364 = vmatpush1.msra.mxu0 %v1363
      %v1365 = vand.u32 %v134, 4294901760
      %1366 = vmatprep.subr.mxu0 %v1365
      %v1367 = vand.u32 %v133, 4294901760
      %1368 = vmatpush1.msra.mxu0 %v1367
      %v1369 = vand.u32 %v136, 4294901760
      %1370 = vmatprep.subr.mxu0 %v1369
      %v1371 = vand.u32 %v135, 4294901760
      %1372 = vmatpush1.msra.mxu0 %v1371
      %v1373 = vand.u32 %v138, 4294901760
      %1374 = vmatprep.subr.mxu0 %v1373
      %v1375 = vand.u32 %v137, 4294901760
      %1376 = vmatpush1.msra.mxu0 %v1375
      %v1377 = vand.u32 %v140, 4294901760
      %1378 = vmatprep.subr.mxu0 %v1377
      %v1379 = vand.u32 %v139, 4294901760
      %1380 = vmatpush1.msra.mxu0 %v1379
      %v1381 = vand.u32 %v142, 4294901760
      %1382 = vmatprep.subr.mxu0 %v1381
      %v1383 = vand.u32 %v141, 4294901760
      %1384 = vmatpush1.msra.mxu0 %v1383
      %v1385 = vand.u32 %v144, 4294901760
      %1386 = vmatprep.subr.mxu0 %v1385
      %v1387 = vand.u32 %v143, 4294901760
      %1388 = vmatpush1.msra.mxu0 %v1387
      %v1389 = vand.u32 %v146, 4294901760
      %1390 = vmatprep.subr.mxu0 %v1389
      %v1391 = vand.u32 %v145, 4294901760
      %1392 = vmatpush1.msra.mxu0 %v1391
      %v1393 = vand.u32 %v148, 4294901760
      %1394 = vmatprep.subr.mxu0 %v1393
      %v1395 = vand.u32 %v147, 4294901760
      %1396 = vmatpush1.msra.mxu0 %v1395
      %v1397 = vand.u32 %v150, 4294901760
      %1398 = vmatprep.subr.mxu0 %v1397
      %v1399 = vand.u32 %v149, 4294901760
      %1400 = vmatpush1.msra.mxu0 %v1399
      %v1401 = vand.u32 %v152, 4294901760
      %1402 = vmatprep.subr.mxu0 %v1401
      %v1403 = vand.u32 %v151, 4294901760
      %1404 = vmatpush1.msra.mxu0 %v1403
      %v1405 = vand.u32 %v154, 4294901760
      %1406 = vmatprep.subr.mxu0 %v1405
      %v1407 = vand.u32 %v153, 4294901760
      %1408 = vmatpush1.msra.mxu0 %v1407
      %v1409 = vand.u32 %v156, 4294901760
      %1410 = vmatprep.subr.mxu0 %v1409
      %v1411 = vand.u32 %v155, 4294901760
      %1412 = vmatpush1.msra.mxu0 %v1411
      %v1413 = vand.u32 %v158, 4294901760
      %1414 = vmatprep.subr.mxu0 %v1413
      %v1415 = vand.u32 %v157, 4294901760
      %1416 = vmatpush1.msra.mxu0 %v1415
      %v1417 = vand.u32 %v160, 4294901760
      %1418 = vmatprep.subr.mxu0 %v1417
      %v1419 = vand.u32 %v159, 4294901760
      %1420 = vmatpush1.msra.mxu0 %v1419
      %v1421 = vand.u32 %v162, 4294901760
      %1422 = vmatprep.subr.mxu0 %v1421
      %v1423 = vand.u32 %v161, 4294901760
      %1424 = vmatpush1.msra.mxu0 %v1423
      %v1425 = vand.u32 %v164, 4294901760
      %1426 = vmatprep.subr.mxu0 %v1425
      %v1427 = vand.u32 %v163, 4294901760
      %1428 = vmatpush1.msra.mxu0 %v1427
      %v1429 = vand.u32 %v166, 4294901760
      %1430 = vmatprep.subr.mxu0 %v1429
      %v1431 = vand.u32 %v165, 4294901760
      %1432 = vmatpush1.msra.mxu0 %v1431
      %v1433 = vand.u32 %v168, 4294901760
      %1434 = vmatprep.subr.mxu0 %v1433
      %v1435 = vand.u32 %v167, 4294901760
      %1436 = vmatpush1.msra.mxu0 %v1435
      %v1437 = vand.u32 %v170, 4294901760
      %1438 = vmatprep.subr.mxu0 %v1437
      %v1439 = vand.u32 %v169, 4294901760
      %1440 = vmatpush1.msra.mxu0 %v1439
      %v1441 = vand.u32 %v172, 4294901760
      %1442 = vmatprep.subr.mxu0 %v1441
      %v1443 = vand.u32 %v171, 4294901760
      %1444 = vmatpush1.msra.mxu0 %v1443
      %v1445 = vand.u32 %v174, 4294901760
      %1446 = vmatprep.subr.mxu0 %v1445
      %v1447 = vand.u32 %v173, 4294901760
      %1448 = vmatpush1.msra.mxu0 %v1447
      %v1449 = vand.u32 %v176, 4294901760
      %1450 = vmatprep.subr.mxu0 %v1449
      %v1451 = vand.u32 %v175, 4294901760
      %1452 = vmatpush1.msra.mxu0 %v1451
      %v1453 = vand.u32 %v178, 4294901760
      %1454 = vmatprep.subr.mxu0 %v1453
      %v1455 = vand.u32 %v177, 4294901760
      %1456 = vmatpush1.msra.mxu0 %v1455
      %v1457 = vand.u32 %v180, 4294901760
      %1458 = vmatprep.subr.mxu0 %v1457
      %v1459 = vand.u32 %v179, 4294901760
      %1460 = vmatpush1.msra.mxu0 %v1459
      %v1461 = vand.u32 %v182, 4294901760
      %1462 = vmatprep.subr.mxu0 %v1461
      %v1463 = vand.u32 %v181, 4294901760
      %1464 = vmatpush1.msra.mxu0 %v1463
      %v1465 = vand.u32 %v184, 4294901760
      %1466 = vmatprep.subr.mxu0 %v1465
      %v1467 = vand.u32 %v183, 4294901760
      %1468 = vmatpush1.msra.mxu0 %v1467
      %v1469 = vand.u32 %v186, 4294901760
      %1470 = vmatprep.subr.mxu0 %v1469
      %v1471 = vand.u32 %v185, 4294901760
      %1472 = vmatpush1.msra.mxu0 %v1471
      %v1473 = vand.u32 %v195, 4294901760
      %1474 = vmatprep.mubr.f32.mxu0 %v1473
      %v1475 = vand.u32 %v194, 4294901760
      %1476 = vmatmul.mubr.f32.gmra.mrb[0].mxu0 %v1475
      %v1477 = vpop.f32.mrb[0].mxu0
      %v1478 = vadd.f32 %v1341, %v1477
      %v1479 = vpop.f32.mrb[0].mxu0
      %v1480 = vadd.f32 %v1343, %v1479
      %1481 = vdwg.mxu0
      %v1482 = vxor.u32 %v1478, 2147483648
      %v1483 = vxor.u32 %v1480, 2147483648
      %v1484 = vmul.f32 %v1482, 1.442695
      %v1485 = vpow.pop %v1484
      %v1486 = vmul.f32 %v1483, 1.442695
      %v1487 = vpow.pop %v1486
      %v1488 = vadd.f32 %v1485, 1.0
      %v1489 = vadd.f32 %v1487, 1.0
      %v1490 = vrcp.pop %v1488
      %v1491 = vmul.f32 1.0, %v1490
      %v1492 = vrcp.pop %v1489
      %v1493 = vmul.f32 1.0, %v1492
      %v1496 = vcombine.low %v1491, %v1493
      %v1498 = vunpack.c.l.s4 1966171168
      %v1499 = vunpack.c.0.s8 %v1498
      %v1500 = vlaneseq
      %v1501 = vshrl.u32 %v1500, 7
      %v1502 = vsub.s32 %v1499, %v1501
      %v1503 = vrot.slane %v1496, %v1502
      %v1504 = vcombine.high %v1503, %v1503
      %v1506 = vunpack.c.l.s4 1966171168
      %v1507 = vunpack.c.0.s8 %v1506
      %v1508 = vlaneseq
      %v1509 = vshrl.u32 %v1508, 7
      %v1510 = vsub.s32 %v1507, %v1509
      %v1511 = vrot.slane %v1503, %v1510
      %v1513 = vunpack.c.l.s4 1966171168
      %v1514 = vunpack.c.0.s8 %v1513
      %v1515 = vlaneseq
      %v1516 = vshrl.u32 %v1515, 7
      %v1517 = vsub.s32 %v1514, %v1516
      %v1518 = vrot.slane %v1504, %v1517
      %v1521 = vlaneseq
      %vm1522 = vcmp.ge.s32.totalorder %v1521, 0
      %vm1523 = vcmp.lt.s32.totalorder %v1521, 256
      %vm1524 = vmand %vm1522, %vm1523
      %1525 = vst.msk [vmem:[#allocation8] sm:$0x3] %vm1524, %v1511
      %1526 = vst.msk [vmem:[#allocation8 + $0x2] sm:$0x3] %vm1524, %v1518
    $region25: #{tpu_custom_call.1} parent=1 // pred_fallthru
      _
    // Predicated region
    $region26: #{tpu_custom_call.1} parent=1 // pred_check
      _
    $region27: #{tpu_custom_call.1} parent=1 // pred_check_branch
      %1528 = sbr.rel (0) target = $region29
    $region28: #{tpu_custom_call.1} parent=1 // pred_region
      %s1530 = ssub.s32 64, 64
      %1531 = vsyncadd [#allocation5], %s1530
      %s1532 = sshll.u32 [#allocation8], 4
      %s1533 = int_to_ptr.vmem [resolvable:$true] %s1532
      %1538 = dma.vmem_to_hbm [thread:$0]  %s1533, 64, %s2, [#allocation5], 32, 32, 2
    $region29: #{tpu_custom_call.1} parent=1 // pred_fallthru
      _
    // Predicated region
    $region30: #{tpu_custom_call.1} parent=1 // pred_check
      _
    $region31: #{tpu_custom_call.1} parent=1 // pred_check_branch
      %1540 = sbr.rel (0) target = $region33
    $region32: #{tpu_custom_call.1} parent=1 // pred_region
      %1541 = dma.done [#allocation5], 64
    $region33: #{tpu_custom_call.1} parent=1 // pred_fallthru
      _
    %1542 = vsyncpa [#allocation4], 1
    %1543 = vsyncpa [#allocation7], 1
    %1544 = vsyncpa [#allocation5], 1

</llo_original>
